<compile_context>
chip_gen: v7x
topology: tpu7x:2x2x1
jax: 0.10.0
libtpu: 0.0.40
codegen_flags: <defaults>
</compile_context>

<pallas_src>
import functools

import jax
import jax.numpy as jnp
from jax import lax
from jax.experimental import pallas as pl
from jax.experimental.pallas import tpu as pltpu


# ----------------------------------------------------------------------------
# Small per-generation helpers
# ----------------------------------------------------------------------------
def _device_kind() -> str:
    try:
        return jax.devices()[0].device_kind.lower()
    except Exception:
        return ""


def _has_bf16_eup() -> bool:
    # v6e / v7x have a bf16 EUP (exp) path; v5e and older do not.
    kind = _device_kind()
    return ("v6" in kind) or ("v7" in kind)


def _default_vmem_limit_bytes() -> int:
    # v7x has 64 MiB physical VMEM (vs 128 MiB on v5e/v6e): derive the scoped
    # limit from the chip instead of hard-coding it.
    try:
        cap = int(pltpu.get_tpu_info().vmem_capacity_bytes)
    except Exception:
        return 48 * 1024 * 1024
    return int(min(cap * 3 // 4, 96 * 1024 * 1024))


# ----------------------------------------------------------------------------
# Weight preparation (hoisted out of the per-call path)
# ----------------------------------------------------------------------------
def prepare_sha_params(params, *, head_block=None, compute_dtype=jnp.bfloat16):
    """Regroup / transpose / cast the dense projection weights once.

    params: dict with full dense weights in PyTorch (out, in) layout:
            wq (E,E), bq (E,), wk (E,E), wv (E,E), bv (E,), wo (E,E), bo (E,),
            num_heads.  The head_dim**-0.5 scaling is folded into q exactly as
            SHAAttention.__init__ does.
    """
    E = params["wq"].shape[0]
    H = int(params["num_heads"])
    D = E // H
    assert D * H == E, "embed_dim must be divisible by num_heads"
    scaling = float(D) ** -0.5

    if head_block is None:
        head_block = max(1, min(H, 256 // max(1, D)))  # target lane width ~256
    head_block = max(1, min(int(head_block), H))
    while H % head_block:
        head_block -= 1
    HB = head_block
    Hb = H // HB
    HBD = HB * D

    f32 = jnp.float32

    def group_cols(w):          # (E_out, E_in) -> (Hb, E_in, HBD)
        return w.T.reshape(E, Hb, HBD).transpose(1, 0, 2)

    return {
        "wq_g": group_cols(params["wq"].astype(f32) * scaling).astype(compute_dtype),
        "bq_g": (params["bq"].astype(f32) * scaling).reshape(Hb, 1, HBD),
        "wk_g": group_cols(params["wk"].astype(f32)).astype(compute_dtype),
        "wv_g": group_cols(params["wv"].astype(f32)).astype(compute_dtype),
        "bv_g": params["bv"].astype(f32).reshape(Hb, 1, HBD),
        "wo_g": params["wo"].astype(f32).T.reshape(Hb, HBD, E).astype(compute_dtype),
        "bo": params["bo"].astype(f32).reshape(1, E),
        "embed_dim": E, "num_heads": H, "head_dim": D,
        "head_block": HB, "num_head_blocks": Hb,
        "compute_dtype": compute_dtype,
    }


# ----------------------------------------------------------------------------
# Kernel
# ----------------------------------------------------------------------------
def _sha_attention_kernel(*refs, hb_heads, head_dim, use_mask, cache_kv,
                          exp_dtype, approx_recip):
    """Grid = (batch, q_tile, head_block); head-block axis is innermost
    (accumulation axis for the resident output tile).

    Inputs (refs, in order):
      x_q   : (1, TQ, E)   query rows for this tile            (compute dtype)
      x_kv  : (1, S,  E)   full sequence (self-attention)      (compute dtype)
      mask  : (1, TQ, S)   additive mask tile (only if use_mask)
      wq    : (Hb, E, HBD) q weights, transposed+scaled, fully resident
      bq    : (Hb, 1, HBD) q bias (scaled, f32)
      wk    : (Hb, E, HBD) k weights (no bias)
      wv    : (Hb, E, HBD) v weights
      bv    : (Hb, 1, HBD) v bias (f32)
      wo    : (Hb, HBD, E) out_proj rows per head block
      bo    : (1, E)       out_proj bias (f32)
    Output:
      out   : (1, TQ, E)   written only at the last head block (input dtype)
    Scratch:
      [k_scr, v_scr] : (Hb, S, HBD) K/V cache (only if cache_kv)
      acc_scr        : (TQ, E) f32 accumulator, resident across head blocks
    """
    n_in = 9 + (1 if use_mask else 0)
    in_refs, out_ref, scratch = refs[:n_in], refs[n_in], refs[n_in + 1:]

    x_q_ref, x_kv_ref = in_refs[0], in_refs[1]
    mask_ref = in_refs[2] if use_mask else None
    (wq_ref, bq_ref, wk_ref, wv_ref, bv_ref, wo_ref, bo_ref) = \
        in_refs[2 + (1 if use_mask else 0):]
    if cache_kv:
        k_scr, v_scr, acc_scr = scratch
    else:
        (acc_scr,) = scratch

    qidx = pl.program_id(1)
    hb = pl.program_id(2)
    cdt = x_q_ref.dtype          # compute dtype (bf16 by default)

    # ---- K/V projection: once per (batch, head block), reused over q tiles.
    if cache_kv:
        @pl.when(qidx == 0)
        def _():
            xkv = x_kv_ref[0]                                    # (S, E)
            k_f = jnp.dot(xkv, wk_ref[hb], preferred_element_type=jnp.float32)
            v_f = jnp.dot(xkv, wv_ref[hb], preferred_element_type=jnp.float32) \
                + bv_ref[hb]
            k_scr[hb] = k_f.astype(cdt)
            v_scr[hb] = v_f.astype(cdt)
        k = k_scr[hb]                                            # (S, HBD)
        v = v_scr[hb]                                            # (S, HBD)
    else:
        xkv = x_kv_ref[0]
        k = jnp.dot(xkv, wk_ref[hb],
                    preferred_element_type=jnp.float32).astype(cdt)
        v = (jnp.dot(xkv, wv_ref[hb], preferred_element_type=jnp.float32)
             + bv_ref[hb]).astype(cdt)

    # ---- Q projection for this q tile / head block (wide lane dim = HBD).
    xq = x_q_ref[0]                                              # (TQ, E)
    q = (jnp.dot(xq, wq_ref[hb], preferred_element_type=jnp.float32)
         + bq_ref[hb]).astype(cdt)                               # (TQ, HBD)

    mask_f = mask_ref[0].astype(jnp.float32) if use_mask else None

    # ---- init the resident f32 accumulator once per (batch, q tile).
    @pl.when(hb == 0)
    def _():
        acc_scr[...] = jnp.zeros_like(acc_scr)

    # ---- per-head attention; fold each head's out_proj rows straight into
    #      the accumulator (no (TQ, HBD) concat / relayout of 64-lane pieces).
    wo_hb = wo_ref[hb]                                           # (HBD, E)
    dn_qk = (((1,), (1,)), ((), ()))                             # contract D
    for j in range(hb_heads):
        sl = slice(j * head_dim, (j + 1) * head_dim)
        s = lax.dot_general(q[:, sl], k[:, sl], dn_qk,
                            preferred_element_type=jnp.float32)  # (TQ, S)
        if use_mask:
            s = s + mask_f
        s = s - jnp.max(s, axis=-1, keepdims=True)
        p = jnp.exp(s.astype(exp_dtype))                         # bf16 EUP on v6e/v7x
        denom = jnp.sum(p.astype(jnp.float32), axis=-1, keepdims=True)
        if approx_recip:
            inv = pl.reciprocal(denom, approx=True)
        else:
            inv = 1.0 / denom
        o_h = jnp.dot(p.astype(cdt), v[:, sl],
                      preferred_element_type=jnp.float32)        # (TQ, D) unnormalized
        o_h = (o_h * inv).astype(cdt)
        acc_scr[...] += jnp.dot(o_h, wo_hb[sl, :],
                                preferred_element_type=jnp.float32)  # (TQ, E)

    # ---- final head block: emit the tile in the output dtype (+ bias once).
    @pl.when(hb == pl.num_programs(2) - 1)
    def _():
        out_ref[0] = (acc_scr[...] + bo_ref[...]).astype(out_ref.dtype)


# ----------------------------------------------------------------------------
# Wrapper
# ----------------------------------------------------------------------------
def sha_attention(hidden_states, params, attention_mask=None,
                  past_key_value=None, *,
                  q_tile=None, head_block=None, compute_dtype=jnp.bfloat16,
                  cache_kv=True, exp_dtype=None, approx_reciprocal=True,
                  vmem_limit_bytes=None):
    """Pallas implementation of SHAAttention.forward (encoder self-attention).

    hidden_states : (bsz, 1, tgt_len, embed_dim)
    params        : raw PyTorch-layout weights (see prepare_sha_params) or an
                    already-prepared dict from prepare_sha_params (preferred;
                    head_block / compute_dtype args are ignored in that case).
    attention_mask: optional additive mask (B,T,S), (B,1,T,S), (1,1,T,S) or (T,S).
    Returns (final_attn, past_key_value_rt) like the PyTorch module
    (past_key_value_rt is None for the non-decoder / non-causal path).
    """
    if past_key_value is not None:
        # TODO(synk): decoder KV-cache / causal / cross-attention branches of
        # SHAAttention.forward are not implemented here.
        raise NotImplementedError(
            "sha_attention only implements the encoder self-attention path "
            "(past_key_value=None).")

    if "wq_g" not in params:
        params = prepare_sha_params(params, head_block=head_block,
                                    compute_dtype=compute_dtype)
    cdt = params["compute_dtype"]
    E = params["embed_dim"]
    D = params["head_dim"]
    HB = params["head_block"]
    Hb = params["num_head_blocks"]
    HBD = HB * D

    B, one, T, E_in = hidden_states.shape
    assert one == 1 and E_in == E
    S = T  # self-attention, no cache

    # ---- query tiling --------------------------------------------------------
    if q_tile is None:
        if T > 256:
            q_tile = 256
        elif (not cache_kv) and B == 1 and T >= 16:
            # v7x: give the (parallel) q axis >= 2 grid points when B == 1.
            q_tile = max(8, ((T + 1) // 2 + 7) // 8 * 8)
        else:
            q_tile = T
    q_tile = min(int(q_tile), T)
    assert q_tile == T or q_tile % 8 == 0, \
        "q_tile must be a multiple of 8 (or == T)"
    TQ = q_tile
    nq = pl.cdiv(T, TQ)
    # NOTE: when T % TQ != 0 the last (padded) q tile reads undefined rows;
    # those rows are independent per-row softmax work and their writes are
    # dropped, so valid rows stay exact (exercised in the tests below).

    if exp_dtype is None:
        exp_dtype = jnp.bfloat16 if _has_bf16_eup() else jnp.float32
    if vmem_limit_bytes is None:
        vmem_limit_bytes = _default_vmem_limit_bytes()

    x = hidden_states.reshape(B, T, E).astype(cdt)

    # ---- mask normalization (only if given; travels in the compute dtype) ----
    use_mask = attention_mask is not None
    if use_mask:
        m = attention_mask
        if m.ndim == 4:                 # (B or 1, 1, T, S) HuggingFace layout
            assert m.shape[1] == 1
            m = m.reshape(m.shape[0], m.shape[2], m.shape[3])
        elif m.ndim == 2:               # (T, S)
            m = m.reshape(1, T, S)
        Bm = m.shape[0]
        assert m.shape == (Bm, T, S) and Bm in (1, B), \
            f"unsupported mask shape {attention_mask.shape}"
        m = m.astype(cdt)

    # ---- specs ----------------------------------------------------------------
    in_specs = [
        pl.BlockSpec((1, TQ, E), lambda b, q, h: (b, q, 0)),   # x (query rows)
        pl.BlockSpec((1, S, E), lambda b, q, h: (b, 0, 0)),    # x (full seq, K/V)
    ]
    inputs = [x, x]
    if use_mask:
        if Bm == B:
            in_specs.append(pl.BlockSpec((1, TQ, S), lambda b, q, h: (b, q, 0)))
        else:   # broadcast a single mask over the batch
            in_specs.append(pl.BlockSpec((1, TQ, S), lambda b, q, h: (0, q, 0)))
        inputs.append(m)
    # Weights fully VMEM-resident: constant index maps -> DMA'd exactly once;
    # the head block is selected in-kernel via a dynamic leading-axis index.
    in_specs += [
        pl.BlockSpec((Hb, E, HBD), lambda b, q, h: (0, 0, 0)),   # wq
        pl.BlockSpec((Hb, 1, HBD), lambda b, q, h: (0, 0, 0)),   # bq
        pl.BlockSpec((Hb, E, HBD), lambda b, q, h: (0, 0, 0)),   # wk
        pl.BlockSpec((Hb, E, HBD), lambda b, q, h: (0, 0, 0)),   # wv
        pl.BlockSpec((Hb, 1, HBD), lambda b, q, h: (0, 0, 0)),   # bv
        pl.BlockSpec((Hb, HBD, E), lambda b, q, h: (0, 0, 0)),   # wo
        pl.BlockSpec((1, E), lambda b, q, h: (0, 0)),            # bo
    ]
    inputs += [params["wq_g"], params["bq_g"], params["wk_g"],
               params["wv_g"], params["bv_g"], params["wo_g"], params["bo"]]

    scratch_shapes = []
    if cache_kv:
        scratch_shapes += [pltpu.VMEM((Hb, S, HBD), cdt),     # K cache
                           pltpu.VMEM((Hb, S, HBD), cdt)]     # V cache
    scratch_shapes += [pltpu.VMEM((TQ, E), jnp.float32)]      # output accumulator

    kernel = functools.partial(
        _sha_attention_kernel, hb_heads=HB, head_dim=D, use_mask=use_mask,
        cache_kv=cache_kv, exp_dtype=exp_dtype, approx_recip=approx_reciprocal)

    # With cache_kv the K/V scratch is filled at q == 0 and reused for q > 0,
    # so the q axis must stay sequential ("arbitrary") to be safe under
    # megacore sharding; parallelism then comes from the batch axis.
    q_sem = "arbitrary" if cache_kv else "parallel"

    out = pl.pallas_call(
        kernel,
        out_shape=jax.ShapeDtypeStruct((B, T, E), hidden_states.dtype),
        grid_spec=pltpu.PrefetchScalarGridSpec(
            num_scalar_prefetch=0,
            grid=(B, nq, Hb),         # head-block axis innermost (accumulation)
            in_specs=in_specs,
            out_specs=pl.BlockSpec((1, TQ, E), lambda b, q, h: (b, q, 0)),
            scratch_shapes=scratch_shapes),
        compiler_params=pltpu.CompilerParams(
            dimension_semantics=("parallel", q_sem, "arbitrary"),
            vmem_limit_bytes=vmem_limit_bytes),
    )(*inputs)

    final_attn = out.reshape(B, 1, T, E)
    past_key_value_rt = None  # is_decoder=False / is_causal=False path
    return final_attn, past_key_value_rt


# ----------------------------------------------------------------------------
# Test utilities
# ----------------------------------------------------------------------------
def make_params(key, embed_dim, num_heads):
    """Deterministic synthetic dense weights mirroring the original
    WhisperAttention projections (PyTorch (out, in) layout)."""
    E = embed_dim
    ks = jax.random.split(key, 7)
    return {
        "wq": jax.random.normal(ks[0], (E, E), jnp.float32) * 0.05,
        "bq": jax.random.normal(ks[1], (E,), jnp.float32) * 0.05,
        "wk": jax.random.normal(ks[2], (E, E), jnp.float32) * 0.05,
        "wv": jax.random.normal(ks[3], (E, E), jnp.float32) * 0.05,
        "bv": jax.random.normal(ks[4], (E,), jnp.float32) * 0.05,
        "wo": jax.random.normal(ks[5], (E, E), jnp.float32) * 0.05,
        "bo": jax.random.normal(ks[6], (E,), jnp.float32) * 0.05,
        "num_heads": num_heads,
    }


def reference(hidden_states, params, attention_mask=None):
    """Pure-JAX f32 reference reproducing the PyTorch forward (no cache)."""
    B, _, T, E = hidden_states.shape
    H = int(params["num_heads"])
    D = E // H
    scaling = float(D) ** -0.5
    x = hidden_states.reshape(B, T, E).astype(jnp.float32)
    q = (x @ params["wq"].T + params["bq"]) * scaling
    k = x @ params["wk"].T
    v = x @ params["wv"].T + params["bv"]
    q = q.reshape(B, T, H, D).transpose(0, 2, 1, 3)
    k = k.reshape(B, T, H, D).transpose(0, 2, 1, 3)
    v = v.reshape(B, T, H, D).transpose(0, 2, 1, 3)
    s = jnp.einsum("bhtd,bhsd->bhts", q, k)
    if attention_mask is not None:
        m = attention_mask.astype(jnp.float32)
        if m.ndim == 2:
            m = m.reshape(1, 1, T, T)
        elif m.ndim == 3:
            m = m.reshape(m.shape[0], 1, T, T)
        s = s + m
    p = jax.nn.softmax(s, axis=-1)
    o = jnp.einsum("bhts,bhsd->bhtd", p, v)
    o = o.transpose(0, 2, 1, 3).reshape(B, T, E)
    out = o @ params["wo"].T + params["bo"]
    return out.reshape(B, 1, T, E)


if __name__ == "__main__":
    bsz, tgt_len, embed_dim, num_heads = 2, 16, 32, 4

    key = jax.random.PRNGKey(0)
    k_w, k_x, k_m = jax.random.split(key, 3)
    params = make_params(k_w, embed_dim, num_heads)
    hidden_states = jax.random.normal(
        k_x, (bsz, 1, tgt_len, embed_dim), jnp.float32)

    # Weight prep is done once (hoisted out of the per-call path).
    prepared = prepare_sha_params(params)                    # HB=4 -> Hb=1
    prepared_hb2 = prepare_sha_params(params, head_block=2)  # HB=2 -> Hb=2

    # 1) No mask, default tiling, cached K/V (single q tile, one head block).
    out1, past_kv = sha_attention(hidden_states, prepared)
    out1 = jax.block_until_ready(out1)
    ref1 = reference(hidden_states, params, None)
    assert out1.shape == (bsz, 1, tgt_len, embed_dim)
    assert out1.dtype == hidden_states.dtype
    assert past_kv is None
    assert jnp.allclose(out1, ref1, atol=5e-2, rtol=5e-2), \
        f"no-mask mismatch, max abs err {float(jnp.max(jnp.abs(out1 - ref1)))}"

    # 2) Masked, tiled queries + multiple head blocks (exercises the K/V
    #    scratch reuse across q tiles and the head-block accumulation).
    mask = jnp.where(
        jax.random.uniform(k_m, (bsz, 1, tgt_len, tgt_len)) > 0.3,
        0.0, -1e9).astype(jnp.float32)
    mask = mask.at[..., 0].set(0.0)   # keep every row at least partly unmasked
    out2, _ = sha_attention(hidden_states, prepared_hb2, attention_mask=mask,
                            q_tile=8)
    out2 = jax.block_until_ready(out2)
    ref2 = reference(hidden_states, params, mask)
    assert jnp.allclose(out2, ref2, atol=5e-2, rtol=5e-2), \
        f"masked mismatch, max abs err {float(jnp.max(jnp.abs(out2 - ref2)))}"

    # 3) B == 1, non-divisible T (padded last q tile) with cache_kv=False
    #    (the q-parallel variant for v7x single-batch calls).
    hs3 = hidden_states[:1, :, :12, :]
    out3, _ = sha_attention(hs3, prepared, q_tile=8, cache_kv=False)
    out3 = jax.block_until_ready(out3)
    ref3 = reference(hs3, params, None)
    assert jnp.allclose(out3, ref3, atol=5e-2, rtol=5e-2), \
        f"padded-tile mismatch, max abs err {float(jnp.max(jnp.abs(out3 - ref3)))}"

    print("KERNEL_OK")
</pallas_src>

<mosaic_0001>
module attributes {stable_mosaic.version = 11 : i64} {
  func.func @_sha_attention_kernel(%arg0: i32, %arg1: i32, %arg2: i32, %arg3: memref<1x16x32xbf16, #tpu.memory_space<vmem>>, %arg4: memref<1x16x32xbf16, #tpu.memory_space<vmem>>, %arg5: memref<1x32x32xbf16, #tpu.memory_space<vmem>>, %arg6: memref<1x1x32xf32, #tpu.memory_space<vmem>>, %arg7: memref<1x32x32xbf16, #tpu.memory_space<vmem>>, %arg8: memref<1x32x32xbf16, #tpu.memory_space<vmem>>, %arg9: memref<1x1x32xf32, #tpu.memory_space<vmem>>, %arg10: memref<1x32x32xbf16, #tpu.memory_space<vmem>>, %arg11: memref<1x32xf32, #tpu.memory_space<vmem>>, %arg12: memref<1x16x32xf32, #tpu.memory_space<vmem>>, %arg13: memref<1x16x32xbf16, #tpu.memory_space<vmem>>, %arg14: memref<1x16x32xbf16, #tpu.memory_space<vmem>>, %arg15: memref<16x32xf32, #tpu.memory_space<vmem>>) attributes {dimension_semantics = [#tpu.dimension_semantics<parallel>, #tpu.dimension_semantics<arbitrary>, #tpu.dimension_semantics<arbitrary>], iteration_bounds = array<i64: 2, 1, 1>, scalar_prefetch = 0 : i64, scratch_operands = 3 : i64, tpu.core_type = #tpu.core_type<tc>, window_params = [{transform_indices = @transform_0, window_bounds = array<i64: 1, 16, 32>}, {transform_indices = @transform_1, window_bounds = array<i64: 1, 16, 32>}, {pipeline_mode = #tpu.pipeline_mode<synchronous>, transform_indices = @transform_2, window_bounds = array<i64: 1, 32, 32>}, {pipeline_mode = #tpu.pipeline_mode<synchronous>, transform_indices = @transform_3, window_bounds = array<i64: 1, 1, 32>}, {pipeline_mode = #tpu.pipeline_mode<synchronous>, transform_indices = @transform_4, window_bounds = array<i64: 1, 32, 32>}, {pipeline_mode = #tpu.pipeline_mode<synchronous>, transform_indices = @transform_5, window_bounds = array<i64: 1, 32, 32>}, {pipeline_mode = #tpu.pipeline_mode<synchronous>, transform_indices = @transform_6, window_bounds = array<i64: 1, 1, 32>}, {pipeline_mode = #tpu.pipeline_mode<synchronous>, transform_indices = @transform_7, window_bounds = array<i64: 1, 32, 32>}, {pipeline_mode = #tpu.pipeline_mode<synchronous>, transform_indices = @transform_8, window_bounds = array<i64: 1, 32>}, {transform_indices = @transform_9, window_bounds = array<i64: 1, 16, 32>}]} {
    %c0_i32 = arith.constant 0 : i32
    %0 = arith.cmpi eq, %arg1, %c0_i32 : i32
    %1 = arith.extui %0 : i1 to i32
    %c0_i32_0 = arith.constant 0 : i32
    %2 = arith.cmpi ne, %1, %c0_i32_0 : i32
    scf.if %2 {
      %c0_53 = arith.constant 0 : index
      %c0_54 = arith.constant 0 : index
      %c0_55 = arith.constant 0 : index
      %118 = vector.load %arg4[%c0_53, %c0_54, %c0_55] : memref<1x16x32xbf16, #tpu.memory_space<vmem>>, vector<1x16x32xbf16>
      %119 = vector.shape_cast %118 : vector<1x16x32xbf16> to vector<16x32xbf16>
      %120 = arith.index_cast %arg2 : i32 to index
      %c0_56 = arith.constant 0 : index
      %c0_57 = arith.constant 0 : index
      %121 = vector.load %arg7[%120, %c0_56, %c0_57] : memref<1x32x32xbf16, #tpu.memory_space<vmem>>, vector<1x32x32xbf16>
      %122 = vector.shape_cast %121 : vector<1x32x32xbf16> to vector<32x32xbf16>
      %cst_58 = arith.constant dense<0.000000e+00> : vector<16x32xf32>
      %123 = tpu.matmul %119, %122, %cst_58 {dimension_numbers = #tpu.dot_dimension_numbers<[1], [0], [0], [1], [0, 0, 1, 1], [], []>} : vector<16x32xbf16>, vector<32x32xbf16>, vector<16x32xf32> -> vector<16x32xf32>
      %124 = arith.index_cast %arg2 : i32 to index
      %c0_59 = arith.constant 0 : index
      %c0_60 = arith.constant 0 : index
      %125 = vector.load %arg8[%124, %c0_59, %c0_60] : memref<1x32x32xbf16, #tpu.memory_space<vmem>>, vector<1x32x32xbf16>
      %126 = vector.shape_cast %125 : vector<1x32x32xbf16> to vector<32x32xbf16>
      %cst_61 = arith.constant dense<0.000000e+00> : vector<16x32xf32>
      %127 = tpu.matmul %119, %126, %cst_61 {dimension_numbers = #tpu.dot_dimension_numbers<[1], [0], [0], [1], [0, 0, 1, 1], [], []>} : vector<16x32xbf16>, vector<32x32xbf16>, vector<16x32xf32> -> vector<16x32xf32>
      %128 = arith.index_cast %arg2 : i32 to index
      %c0_62 = arith.constant 0 : index
      %c0_63 = arith.constant 0 : index
      %129 = vector.load %arg9[%128, %c0_62, %c0_63] : memref<1x1x32xf32, #tpu.memory_space<vmem>>, vector<1x1x32xf32>
      %130 = vector.shape_cast %129 : vector<1x1x32xf32> to vector<1x32xf32>
      %131 = vector.broadcast %130 : vector<1x32xf32> to vector<16x32xf32>
      %132 = arith.addf %127, %131 : vector<16x32xf32>
      %133 = arith.truncf %123 : vector<16x32xf32> to vector<16x32xbf16>
      %134 = arith.index_cast %arg2 : i32 to index
      %c0_64 = arith.constant 0 : index
      %c0_65 = arith.constant 0 : index
      %135 = vector.load %arg13[%134, %c0_64, %c0_65] : memref<1x16x32xbf16, #tpu.memory_space<vmem>>, vector<1x16x32xbf16>
      %136 = vector.shape_cast %135 : vector<1x16x32xbf16> to vector<16x32xbf16>
      %137 = vector.shape_cast %133 : vector<16x32xbf16> to vector<1x16x32xbf16>
      tpu.vector_store %arg13[%134, %c0_64, %c0_65], %137 {strides = array<i32>} : memref<1x16x32xbf16, #tpu.memory_space<vmem>>, vector<1x16x32xbf16>,
      %138 = arith.truncf %132 : vector<16x32xf32> to vector<16x32xbf16>
      %139 = arith.index_cast %arg2 : i32 to index
      %c0_66 = arith.constant 0 : index
      %c0_67 = arith.constant 0 : index
      %140 = vector.load %arg14[%139, %c0_66, %c0_67] : memref<1x16x32xbf16, #tpu.memory_space<vmem>>, vector<1x16x32xbf16>
      %141 = vector.shape_cast %140 : vector<1x16x32xbf16> to vector<16x32xbf16>
      %142 = vector.shape_cast %138 : vector<16x32xbf16> to vector<1x16x32xbf16>
      tpu.vector_store %arg14[%139, %c0_66, %c0_67], %142 {strides = array<i32>} : memref<1x16x32xbf16, #tpu.memory_space<vmem>>, vector<1x16x32xbf16>,
    } else {
    }
    %3 = arith.index_cast %arg2 : i32 to index
    %c0 = arith.constant 0 : index
    %c0_1 = arith.constant 0 : index
    %4 = vector.load %arg13[%3, %c0, %c0_1] : memref<1x16x32xbf16, #tpu.memory_space<vmem>>, vector<1x16x32xbf16>
    %5 = vector.shape_cast %4 : vector<1x16x32xbf16> to vector<16x32xbf16>
    %6 = arith.index_cast %arg2 : i32 to index
    %c0_2 = arith.constant 0 : index
    %c0_3 = arith.constant 0 : index
    %7 = vector.load %arg14[%6, %c0_2, %c0_3] : memref<1x16x32xbf16, #tpu.memory_space<vmem>>, vector<1x16x32xbf16>
    %8 = vector.shape_cast %7 : vector<1x16x32xbf16> to vector<16x32xbf16>
    %c0_4 = arith.constant 0 : index
    %c0_5 = arith.constant 0 : index
    %c0_6 = arith.constant 0 : index
    %9 = vector.load %arg3[%c0_4, %c0_5, %c0_6] : memref<1x16x32xbf16, #tpu.memory_space<vmem>>, vector<1x16x32xbf16>
    %10 = vector.shape_cast %9 : vector<1x16x32xbf16> to vector<16x32xbf16>
    %11 = arith.index_cast %arg2 : i32 to index
    %c0_7 = arith.constant 0 : index
    %c0_8 = arith.constant 0 : index
    %12 = vector.load %arg5[%11, %c0_7, %c0_8] : memref<1x32x32xbf16, #tpu.memory_space<vmem>>, vector<1x32x32xbf16>
    %13 = vector.shape_cast %12 : vector<1x32x32xbf16> to vector<32x32xbf16>
    %cst = arith.constant dense<0.000000e+00> : vector<16x32xf32>
    %14 = tpu.matmul %10, %13, %cst {dimension_numbers = #tpu.dot_dimension_numbers<[1], [0], [0], [1], [0, 0, 1, 1], [], []>} : vector<16x32xbf16>, vector<32x32xbf16>, vector<16x32xf32> -> vector<16x32xf32>
    %15 = arith.index_cast %arg2 : i32 to index
    %c0_9 = arith.constant 0 : index
    %c0_10 = arith.constant 0 : index
    %16 = vector.load %arg6[%15, %c0_9, %c0_10] : memref<1x1x32xf32, #tpu.memory_space<vmem>>, vector<1x1x32xf32>
    %17 = vector.shape_cast %16 : vector<1x1x32xf32> to vector<1x32xf32>
    %18 = vector.broadcast %17 : vector<1x32xf32> to vector<16x32xf32>
    %19 = arith.addf %14, %18 : vector<16x32xf32>
    %20 = arith.truncf %19 : vector<16x32xf32> to vector<16x32xbf16>
    %c0_i32_11 = arith.constant 0 : i32
    %21 = arith.cmpi eq, %arg2, %c0_i32_11 : i32
    %22 = arith.extui %21 : i1 to i32
    %c0_i32_12 = arith.constant 0 : i32
    %23 = arith.cmpi ne, %22, %c0_i32_12 : i32
    scf.if %23 {
      %cst_53 = arith.constant 0.000000e+00 : f32
      %118 = vector.broadcast %cst_53 : f32 to vector<16x32xf32>
      %c0_54 = arith.constant 0 : index
      %c0_55 = arith.constant 0 : index
      %119 = vector.load %arg15[%c0_54, %c0_55] : memref<16x32xf32, #tpu.memory_space<vmem>>, vector<16x32xf32>
      tpu.vector_store %arg15[%c0_54, %c0_55], %118 {strides = array<i32>} : memref<16x32xf32, #tpu.memory_space<vmem>>, vector<16x32xf32>,
    } else {
    }
    %24 = arith.index_cast %arg2 : i32 to index
    %c0_13 = arith.constant 0 : index
    %c0_14 = arith.constant 0 : index
    %25 = vector.load %arg10[%24, %c0_13, %c0_14] : memref<1x32x32xbf16, #tpu.memory_space<vmem>>, vector<1x32x32xbf16>
    %26 = vector.shape_cast %25 : vector<1x32x32xbf16> to vector<32x32xbf16>
    %27 = vector.extract_strided_slice %20 {offsets = [0, 0], sizes = [16, 8], strides = [1, 1]} : vector<16x32xbf16> to vector<16x8xbf16>
    %28 = vector.extract_strided_slice %5 {offsets = [0, 0], sizes = [16, 8], strides = [1, 1]} : vector<16x32xbf16> to vector<16x8xbf16>
    %cst_15 = arith.constant dense<0.000000e+00> : vector<16x16xf32>
    %29 = tpu.matmul %27, %28, %cst_15 {dimension_numbers = #tpu.dot_dimension_numbers<[1], [1], [0], [0], [0, 0, 1, 0], [], []>} : vector<16x8xbf16>, vector<16x8xbf16>, vector<16x16xf32> -> vector<16x16xf32>
    %cst_16 = arith.constant dense<0xFF800000> : vector<16xf32>
    %30 = vector.multi_reduction <maximumf>, %29, %cst_16 [1] : vector<16x16xf32> to vector<16xf32>
    %31 = vector.shape_cast %30 : vector<16xf32> to vector<16x1xf32>
    %32 = vector.broadcast %31 : vector<16x1xf32> to vector<16x16xf32>
    %33 = arith.subf %29, %32 : vector<16x16xf32>
    %34 = math.exp %33 : vector<16x16xf32>
    %cst_17 = arith.constant dense<0.000000e+00> : vector<16xf32>
    %35 = vector.multi_reduction <add>, %34, %cst_17 [1] : vector<16x16xf32> to vector<16xf32>
    %36 = vector.shape_cast %35 : vector<16xf32> to vector<16x1xf32>
    %37 = tpu.reciprocal %36 {approx = true} : vector<16x1xf32> -> vector<16x1xf32>
    %38 = arith.truncf %34 : vector<16x16xf32> to vector<16x16xbf16>
    %39 = vector.extract_strided_slice %8 {offsets = [0, 0], sizes = [16, 8], strides = [1, 1]} : vector<16x32xbf16> to vector<16x8xbf16>
    %cst_18 = arith.constant dense<0.000000e+00> : vector<16x8xf32>
    %40 = tpu.matmul %38, %39, %cst_18 {dimension_numbers = #tpu.dot_dimension_numbers<[1], [0], [0], [1], [0, 0, 1, 1], [], []>} : vector<16x16xbf16>, vector<16x8xbf16>, vector<16x8xf32> -> vector<16x8xf32>
    %41 = vector.broadcast %37 : vector<16x1xf32> to vector<16x8xf32>
    %42 = arith.mulf %40, %41 : vector<16x8xf32>
    %43 = arith.truncf %42 : vector<16x8xf32> to vector<16x8xbf16>
    %c0_19 = arith.constant 0 : index
    %c0_20 = arith.constant 0 : index
    %44 = vector.load %arg15[%c0_19, %c0_20] : memref<16x32xf32, #tpu.memory_space<vmem>>, vector<16x32xf32>
    %45 = vector.extract_strided_slice %26 {offsets = [0, 0], sizes = [8, 32], strides = [1, 1]} : vector<32x32xbf16> to vector<8x32xbf16>
    %cst_21 = arith.constant dense<0.000000e+00> : vector<16x32xf32>
    %46 = tpu.matmul %43, %45, %cst_21 {dimension_numbers = #tpu.dot_dimension_numbers<[1], [0], [0], [1], [0, 0, 1, 1], [], []>} : vector<16x8xbf16>, vector<8x32xbf16>, vector<16x32xf32> -> vector<16x32xf32>
    %47 = arith.addf %44, %46 : vector<16x32xf32>
    %c0_22 = arith.constant 0 : index
    %c0_23 = arith.constant 0 : index
    %48 = vector.load %arg15[%c0_22, %c0_23] : memref<16x32xf32, #tpu.memory_space<vmem>>, vector<16x32xf32>
    tpu.vector_store %arg15[%c0_22, %c0_23], %47 {strides = array<i32>} : memref<16x32xf32, #tpu.memory_space<vmem>>, vector<16x32xf32>,
    %49 = vector.extract_strided_slice %20 {offsets = [0, 8], sizes = [16, 8], strides = [1, 1]} : vector<16x32xbf16> to vector<16x8xbf16>
    %50 = vector.extract_strided_slice %5 {offsets = [0, 8], sizes = [16, 8], strides = [1, 1]} : vector<16x32xbf16> to vector<16x8xbf16>
    %cst_24 = arith.constant dense<0.000000e+00> : vector<16x16xf32>
    %51 = tpu.matmul %49, %50, %cst_24 {dimension_numbers = #tpu.dot_dimension_numbers<[1], [1], [0], [0], [0, 0, 1, 0], [], []>} : vector<16x8xbf16>, vector<16x8xbf16>, vector<16x16xf32> -> vector<16x16xf32>
    %cst_25 = arith.constant dense<0xFF800000> : vector<16xf32>
    %52 = vector.multi_reduction <maximumf>, %51, %cst_25 [1] : vector<16x16xf32> to vector<16xf32>
    %53 = vector.shape_cast %52 : vector<16xf32> to vector<16x1xf32>
    %54 = vector.broadcast %53 : vector<16x1xf32> to vector<16x16xf32>
    %55 = arith.subf %51, %54 : vector<16x16xf32>
    %56 = math.exp %55 : vector<16x16xf32>
    %cst_26 = arith.constant dense<0.000000e+00> : vector<16xf32>
    %57 = vector.multi_reduction <add>, %56, %cst_26 [1] : vector<16x16xf32> to vector<16xf32>
    %58 = vector.shape_cast %57 : vector<16xf32> to vector<16x1xf32>
    %59 = tpu.reciprocal %58 {approx = true} : vector<16x1xf32> -> vector<16x1xf32>
    %60 = arith.truncf %56 : vector<16x16xf32> to vector<16x16xbf16>
    %61 = vector.extract_strided_slice %8 {offsets = [0, 8], sizes = [16, 8], strides = [1, 1]} : vector<16x32xbf16> to vector<16x8xbf16>
    %cst_27 = arith.constant dense<0.000000e+00> : vector<16x8xf32>
    %62 = tpu.matmul %60, %61, %cst_27 {dimension_numbers = #tpu.dot_dimension_numbers<[1], [0], [0], [1], [0, 0, 1, 1], [], []>} : vector<16x16xbf16>, vector<16x8xbf16>, vector<16x8xf32> -> vector<16x8xf32>
    %63 = vector.broadcast %59 : vector<16x1xf32> to vector<16x8xf32>
    %64 = arith.mulf %62, %63 : vector<16x8xf32>
    %65 = arith.truncf %64 : vector<16x8xf32> to vector<16x8xbf16>
    %c0_28 = arith.constant 0 : index
    %c0_29 = arith.constant 0 : index
    %66 = vector.load %arg15[%c0_28, %c0_29] : memref<16x32xf32, #tpu.memory_space<vmem>>, vector<16x32xf32>
    %67 = vector.extract_strided_slice %26 {offsets = [8, 0], sizes = [8, 32], strides = [1, 1]} : vector<32x32xbf16> to vector<8x32xbf16>
    %cst_30 = arith.constant dense<0.000000e+00> : vector<16x32xf32>
    %68 = tpu.matmul %65, %67, %cst_30 {dimension_numbers = #tpu.dot_dimension_numbers<[1], [0], [0], [1], [0, 0, 1, 1], [], []>} : vector<16x8xbf16>, vector<8x32xbf16>, vector<16x32xf32> -> vector<16x32xf32>
    %69 = arith.addf %66, %68 : vector<16x32xf32>
    %c0_31 = arith.constant 0 : index
    %c0_32 = arith.constant 0 : index
    %70 = vector.load %arg15[%c0_31, %c0_32] : memref<16x32xf32, #tpu.memory_space<vmem>>, vector<16x32xf32>
    tpu.vector_store %arg15[%c0_31, %c0_32], %69 {strides = array<i32>} : memref<16x32xf32, #tpu.memory_space<vmem>>, vector<16x32xf32>,
    %71 = vector.extract_strided_slice %20 {offsets = [0, 16], sizes = [16, 8], strides = [1, 1]} : vector<16x32xbf16> to vector<16x8xbf16>
    %72 = vector.extract_strided_slice %5 {offsets = [0, 16], sizes = [16, 8], strides = [1, 1]} : vector<16x32xbf16> to vector<16x8xbf16>
    %cst_33 = arith.constant dense<0.000000e+00> : vector<16x16xf32>
    %73 = tpu.matmul %71, %72, %cst_33 {dimension_numbers = #tpu.dot_dimension_numbers<[1], [1], [0], [0], [0, 0, 1, 0], [], []>} : vector<16x8xbf16>, vector<16x8xbf16>, vector<16x16xf32> -> vector<16x16xf32>
    %cst_34 = arith.constant dense<0xFF800000> : vector<16xf32>
    %74 = vector.multi_reduction <maximumf>, %73, %cst_34 [1] : vector<16x16xf32> to vector<16xf32>
    %75 = vector.shape_cast %74 : vector<16xf32> to vector<16x1xf32>
    %76 = vector.broadcast %75 : vector<16x1xf32> to vector<16x16xf32>
    %77 = arith.subf %73, %76 : vector<16x16xf32>
    %78 = math.exp %77 : vector<16x16xf32>
    %cst_35 = arith.constant dense<0.000000e+00> : vector<16xf32>
    %79 = vector.multi_reduction <add>, %78, %cst_35 [1] : vector<16x16xf32> to vector<16xf32>
    %80 = vector.shape_cast %79 : vector<16xf32> to vector<16x1xf32>
    %81 = tpu.reciprocal %80 {approx = true} : vector<16x1xf32> -> vector<16x1xf32>
    %82 = arith.truncf %78 : vector<16x16xf32> to vector<16x16xbf16>
    %83 = vector.extract_strided_slice %8 {offsets = [0, 16], sizes = [16, 8], strides = [1, 1]} : vector<16x32xbf16> to vector<16x8xbf16>
    %cst_36 = arith.constant dense<0.000000e+00> : vector<16x8xf32>
    %84 = tpu.matmul %82, %83, %cst_36 {dimension_numbers = #tpu.dot_dimension_numbers<[1], [0], [0], [1], [0, 0, 1, 1], [], []>} : vector<16x16xbf16>, vector<16x8xbf16>, vector<16x8xf32> -> vector<16x8xf32>
    %85 = vector.broadcast %81 : vector<16x1xf32> to vector<16x8xf32>
    %86 = arith.mulf %84, %85 : vector<16x8xf32>
    %87 = arith.truncf %86 : vector<16x8xf32> to vector<16x8xbf16>
    %c0_37 = arith.constant 0 : index
    %c0_38 = arith.constant 0 : index
    %88 = vector.load %arg15[%c0_37, %c0_38] : memref<16x32xf32, #tpu.memory_space<vmem>>, vector<16x32xf32>
    %89 = vector.extract_strided_slice %26 {offsets = [16, 0], sizes = [8, 32], strides = [1, 1]} : vector<32x32xbf16> to vector<8x32xbf16>
    %cst_39 = arith.constant dense<0.000000e+00> : vector<16x32xf32>
    %90 = tpu.matmul %87, %89, %cst_39 {dimension_numbers = #tpu.dot_dimension_numbers<[1], [0], [0], [1], [0, 0, 1, 1], [], []>} : vector<16x8xbf16>, vector<8x32xbf16>, vector<16x32xf32> -> vector<16x32xf32>
    %91 = arith.addf %88, %90 : vector<16x32xf32>
    %c0_40 = arith.constant 0 : index
    %c0_41 = arith.constant 0 : index
    %92 = vector.load %arg15[%c0_40, %c0_41] : memref<16x32xf32, #tpu.memory_space<vmem>>, vector<16x32xf32>
    tpu.vector_store %arg15[%c0_40, %c0_41], %91 {strides = array<i32>} : memref<16x32xf32, #tpu.memory_space<vmem>>, vector<16x32xf32>,
    %93 = vector.extract_strided_slice %20 {offsets = [0, 24], sizes = [16, 8], strides = [1, 1]} : vector<16x32xbf16> to vector<16x8xbf16>
    %94 = vector.extract_strided_slice %5 {offsets = [0, 24], sizes = [16, 8], strides = [1, 1]} : vector<16x32xbf16> to vector<16x8xbf16>
    %cst_42 = arith.constant dense<0.000000e+00> : vector<16x16xf32>
    %95 = tpu.matmul %93, %94, %cst_42 {dimension_numbers = #tpu.dot_dimension_numbers<[1], [1], [0], [0], [0, 0, 1, 0], [], []>} : vector<16x8xbf16>, vector<16x8xbf16>, vector<16x16xf32> -> vector<16x16xf32>
    %cst_43 = arith.constant dense<0xFF800000> : vector<16xf32>
    %96 = vector.multi_reduction <maximumf>, %95, %cst_43 [1] : vector<16x16xf32> to vector<16xf32>
    %97 = vector.shape_cast %96 : vector<16xf32> to vector<16x1xf32>
    %98 = vector.broadcast %97 : vector<16x1xf32> to vector<16x16xf32>
    %99 = arith.subf %95, %98 : vector<16x16xf32>
    %100 = math.exp %99 : vector<16x16xf32>
    %cst_44 = arith.constant dense<0.000000e+00> : vector<16xf32>
    %101 = vector.multi_reduction <add>, %100, %cst_44 [1] : vector<16x16xf32> to vector<16xf32>
    %102 = vector.shape_cast %101 : vector<16xf32> to vector<16x1xf32>
    %103 = tpu.reciprocal %102 {approx = true} : vector<16x1xf32> -> vector<16x1xf32>
    %104 = arith.truncf %100 : vector<16x16xf32> to vector<16x16xbf16>
    %105 = vector.extract_strided_slice %8 {offsets = [0, 24], sizes = [16, 8], strides = [1, 1]} : vector<16x32xbf16> to vector<16x8xbf16>
    %cst_45 = arith.constant dense<0.000000e+00> : vector<16x8xf32>
    %106 = tpu.matmul %104, %105, %cst_45 {dimension_numbers = #tpu.dot_dimension_numbers<[1], [0], [0], [1], [0, 0, 1, 1], [], []>} : vector<16x16xbf16>, vector<16x8xbf16>, vector<16x8xf32> -> vector<16x8xf32>
    %107 = vector.broadcast %103 : vector<16x1xf32> to vector<16x8xf32>
    %108 = arith.mulf %106, %107 : vector<16x8xf32>
    %109 = arith.truncf %108 : vector<16x8xf32> to vector<16x8xbf16>
    %c0_46 = arith.constant 0 : index
    %c0_47 = arith.constant 0 : index
    %110 = vector.load %arg15[%c0_46, %c0_47] : memref<16x32xf32, #tpu.memory_space<vmem>>, vector<16x32xf32>
    %111 = vector.extract_strided_slice %26 {offsets = [24, 0], sizes = [8, 32], strides = [1, 1]} : vector<32x32xbf16> to vector<8x32xbf16>
    %cst_48 = arith.constant dense<0.000000e+00> : vector<16x32xf32>
    %112 = tpu.matmul %109, %111, %cst_48 {dimension_numbers = #tpu.dot_dimension_numbers<[1], [0], [0], [1], [0, 0, 1, 1], [], []>} : vector<16x8xbf16>, vector<8x32xbf16>, vector<16x32xf32> -> vector<16x32xf32>
    %113 = arith.addf %110, %112 : vector<16x32xf32>
    %c0_49 = arith.constant 0 : index
    %c0_50 = arith.constant 0 : index
    %114 = vector.load %arg15[%c0_49, %c0_50] : memref<16x32xf32, #tpu.memory_space<vmem>>, vector<16x32xf32>
    tpu.vector_store %arg15[%c0_49, %c0_50], %113 {strides = array<i32>} : memref<16x32xf32, #tpu.memory_space<vmem>>, vector<16x32xf32>,
    %c0_i32_51 = arith.constant 0 : i32
    %115 = arith.cmpi eq, %arg2, %c0_i32_51 : i32
    %116 = arith.extui %115 : i1 to i32
    %c0_i32_52 = arith.constant 0 : i32
    %117 = arith.cmpi ne, %116, %c0_i32_52 : i32
    scf.if %117 {
      %c0_53 = arith.constant 0 : index
      %c0_54 = arith.constant 0 : index
      %118 = vector.load %arg15[%c0_53, %c0_54] : memref<16x32xf32, #tpu.memory_space<vmem>>, vector<16x32xf32>
      %c0_55 = arith.constant 0 : index
      %c0_56 = arith.constant 0 : index
      %119 = vector.load %arg11[%c0_55, %c0_56] : memref<1x32xf32, #tpu.memory_space<vmem>>, vector<1x32xf32>
      %120 = vector.broadcast %119 : vector<1x32xf32> to vector<16x32xf32>
      %121 = arith.addf %118, %120 : vector<16x32xf32>
      %c0_57 = arith.constant 0 : index
      %c0_58 = arith.constant 0 : index
      %c0_59 = arith.constant 0 : index
      %122 = vector.load %arg12[%c0_57, %c0_58, %c0_59] : memref<1x16x32xf32, #tpu.memory_space<vmem>>, vector<1x16x32xf32>
      %123 = vector.shape_cast %122 : vector<1x16x32xf32> to vector<16x32xf32>
      %124 = vector.shape_cast %121 : vector<16x32xf32> to vector<1x16x32xf32>
      tpu.vector_store %arg12[%c0_57, %c0_58, %c0_59], %124 {strides = array<i32>} : memref<1x16x32xf32, #tpu.memory_space<vmem>>, vector<1x16x32xf32>,
    } else {
    }
    return
  }
  func.func @transform_0(%arg0: i32, %arg1: i32, %arg2: i32) -> (i32, i32, i32) {
    %c0_i32 = arith.constant 0 : i32
    %c0_i32_0 = arith.constant 0 : i32
    return %arg0, %arg1, %c0_i32 : i32, i32, i32
  }
  func.func @transform_1(%arg0: i32, %arg1: i32, %arg2: i32) -> (i32, i32, i32) {
    %c0_i32 = arith.constant 0 : i32
    %c0_i32_0 = arith.constant 0 : i32
    %c0_i32_1 = arith.constant 0 : i32
    return %arg0, %c0_i32, %c0_i32_0 : i32, i32, i32
  }
  func.func @transform_2(%arg0: i32, %arg1: i32, %arg2: i32) -> (i32, i32, i32) {
    %c0_i32 = arith.constant 0 : i32
    %c0_i32_0 = arith.constant 0 : i32
    %c0_i32_1 = arith.constant 0 : i32
    %c0_i32_2 = arith.constant 0 : i32
    return %c0_i32, %c0_i32_0, %c0_i32_1 : i32, i32, i32
  }
  func.func @transform_3(%arg0: i32, %arg1: i32, %arg2: i32) -> (i32, i32, i32) {
    %c0_i32 = arith.constant 0 : i32
    %c0_i32_0 = arith.constant 0 : i32
    %c0_i32_1 = arith.constant 0 : i32
    %c0_i32_2 = arith.constant 0 : i32
    return %c0_i32, %c0_i32_0, %c0_i32_1 : i32, i32, i32
  }
  func.func @transform_4(%arg0: i32, %arg1: i32, %arg2: i32) -> (i32, i32, i32) {
    %c0_i32 = arith.constant 0 : i32
    %c0_i32_0 = arith.constant 0 : i32
    %c0_i32_1 = arith.constant 0 : i32
    %c0_i32_2 = arith.constant 0 : i32
    return %c0_i32, %c0_i32_0, %c0_i32_1 : i32, i32, i32
  }
  func.func @transform_5(%arg0: i32, %arg1: i32, %arg2: i32) -> (i32, i32, i32) {
    %c0_i32 = arith.constant 0 : i32
    %c0_i32_0 = arith.constant 0 : i32
    %c0_i32_1 = arith.constant 0 : i32
    %c0_i32_2 = arith.constant 0 : i32
    return %c0_i32, %c0_i32_0, %c0_i32_1 : i32, i32, i32
  }
  func.func @transform_6(%arg0: i32, %arg1: i32, %arg2: i32) -> (i32, i32, i32) {
    %c0_i32 = arith.constant 0 : i32
    %c0_i32_0 = arith.constant 0 : i32
    %c0_i32_1 = arith.constant 0 : i32
    %c0_i32_2 = arith.constant 0 : i32
    return %c0_i32, %c0_i32_0, %c0_i32_1 : i32, i32, i32
  }
  func.func @transform_7(%arg0: i32, %arg1: i32, %arg2: i32) -> (i32, i32, i32) {
    %c0_i32 = arith.constant 0 : i32
    %c0_i32_0 = arith.constant 0 : i32
    %c0_i32_1 = arith.constant 0 : i32
    %c0_i32_2 = arith.constant 0 : i32
    return %c0_i32, %c0_i32_0, %c0_i32_1 : i32, i32, i32
  }
  func.func @transform_8(%arg0: i32, %arg1: i32, %arg2: i32) -> (i32, i32) {
    %c0_i32 = arith.constant 0 : i32
    %c0_i32_0 = arith.constant 0 : i32
    %c0_i32_1 = arith.constant 0 : i32
    return %c0_i32, %c0_i32_0 : i32, i32
  }
  func.func @transform_9(%arg0: i32, %arg1: i32, %arg2: i32) -> (i32, i32, i32) {
    %c0_i32 = arith.constant 0 : i32
    %c0_i32_0 = arith.constant 0 : i32
    return %arg0, %arg1, %c0_i32 : i32, i32, i32
  }
}

</mosaic_0001>

<llo_original>
// kernel: tpu_custom_call.1
$region0: #{tpu_custom_call.1}
  #allocation0 [shape = 'u32[]', space=smem, size = 0x4, offset = 0x4, fixed_abs, tag = 'smem constant byte address 0x4 - core index']
  #allocation1 [shape = 'u32[144,128]{1,0:T(1,128)}', space=vmem, size = 0x12000, scoped, tag = 'internal scratch']
  #allocation2 [shape = 'bf16[1,16,32]{2,1,0:T(16,128)(2,1)}', space=vmem, size = 0x1000, scoped, tag = 'scratch operand']
  #allocation3 [shape = 'bf16[1,16,32]{2,1,0:T(16,128)(2,1)}', space=vmem, size = 0x1000, scoped, tag = 'scratch operand']
  #allocation4 [shape = 'f32[16,32]{1,0:T(8,128)}', space=vmem, size = 0x2000, scoped, tag = 'scratch operand']
  %s0 = inlined_call_operand.hbm [shape: bf16[2,16,32], index: 0, kind: input, shape index: {}]
  %s1 = inlined_call_operand.hbm [shape: bf16[2,16,32], index: 1, kind: input, shape index: {}]
  %s2 = inlined_call_operand.hbm [shape: bf16[1,32,32], index: 2, kind: input, shape index: {}]
  %s3 = inlined_call_operand.vmem [shape: f32[1,1,32], index: 3, kind: input, shape index: {}]
  %s4 = inlined_call_operand.hbm [shape: bf16[1,32,32], index: 4, kind: input, shape index: {}]
  %s5 = inlined_call_operand.vmem [shape: bf16[1,32,32], index: 5, kind: input, shape index: {}]
  %s6 = inlined_call_operand.vmem [shape: f32[1,1,32], index: 6, kind: input, shape index: {}]
  %s7 = inlined_call_operand.hbm [shape: bf16[1,32,32], index: 7, kind: input, shape index: {}]
  %s8 = inlined_call_operand.vmem [shape: f32[1,32], index: 8, kind: input, shape index: {}]
  %s9 = inlined_call_operand.hbm [shape: f32[2,16,32], index: 9, kind: output, shape index: {}]
  %s10 = sld [smem:[#allocation0]]
  $region101: #{tpu_custom_call.1} parent=0
    _
  %s12 = ssub.s32 1, %s10
  %s13 = scalar_select 0, %s12, %s10
  $region1: #{tpu_custom_call.1} parent=0
    #allocation5 [shape = 'u8[8192]{0}', space=vmem, size = 0x2000, scoped, tag = 'input window, operand 0']
    #allocation6 [shape = 's32[2]{0}', space=sflag, size = 0x8, scoped, tag = 'scoped memory for tpu_custom_call.1']
    #allocation7 [shape = 's32[2]{0}', space=sflag, size = 0x8, scoped, tag = 'scoped memory for tpu_custom_call.1']
    #allocation8 [shape = 'u8[8192]{0}', space=vmem, size = 0x2000, scoped, tag = 'input window, operand 1']
    #allocation9 [shape = 's32[2]{0}', space=sflag, size = 0x8, scoped, tag = 'scoped memory for tpu_custom_call.1']
    #allocation10 [shape = 'u8[8192]{0}', space=vmem, size = 0x2000, scoped, tag = 'input window, operand 2, single buffered']
    #allocation11 [shape = 'u8[8192]{0}', space=vmem, size = 0x2000, scoped, tag = 'input window, operand 4, single buffered']
    #allocation12 [shape = 's32[1]{0}', space=sflag, size = 0x4, scoped, tag = 'scoped memory for tpu_custom_call.1']
    #allocation13 [shape = 'u8[8192]{0}', space=vmem, size = 0x2000, scoped, tag = 'input window, operand 7, single buffered']
    #allocation14 [shape = 'u8[16384]{0}', space=vmem, size = 0x4000, scoped, tag = 'output window, operand 0']
    %14 = vsyncpa [#allocation6], 0
    %s15 = scalar_lea.sflag [#allocation6], 1
    %16 = vsyncpa %s15, 0
    %17 = vsyncpa [#allocation9], 0
    %s18 = scalar_lea.sflag [#allocation9], 1
    %19 = vsyncpa %s18, 0
    %20 = vsyncpa [#allocation12], 0
    %21 = vsyncpa [#allocation7], 0
    %s22 = scalar_lea.sflag [#allocation7], 1
    %23 = vsyncpa %s22, 0
    loop: start=0, step=1, limit=4
    $region2: #{tpu_custom_call.1} parent=1 // loop_pre_header
      _
    $region3: #{tpu_custom_call.1} parent=1 // loop_header
      %s25 = sphi 0, %s29
      %p26 = scmp.ge.s32.totalorder %s25, 4
      %s32 = sphi 0, %s51
      %s33 = sphi 0, %s47
      %s34 = sphi 0, %s43
      %s35 = sphi 0, %s32
      %s36 = sphi 0, %s33
      %s37 = sphi 0, %s34
      %s38 = sphi 0, %s35
      %s39 = sphi 0, %s36
      %s40 = sphi 0, %s37
      %s56 = sphi 0, %s58
      %s59 = sphi 0, %s56
      %s60 = sphi 0, %s59
      %s76 = sphi 0, %s60
      %s82 = sphi 0, %s84
      %s85 = sphi 0, %s82
      %s86 = sphi 0, %s85
      %s102 = sphi 0, %s86
      %s106 = sphi 0, %s106
      %s108 = sphi 0, %s106
      %s109 = sphi 0, %s108
      %s123 = sphi 0, %s109
      %s127 = sphi 0, %s127
      %s129 = sphi 0, %s127
      %s130 = sphi 0, %s129
      %s144 = sphi 0, %s130
      %s148 = sphi 0, %s148
      %s150 = sphi 0, %s148
      %s151 = sphi 0, %s150
      %s165 = sphi 0, %s151
      %s169 = sphi 0, %s169
      %s171 = sphi 0, %s169
      %s172 = sphi 0, %s171
      %s186 = sphi 0, %s172
      %s190 = sphi 0, %s190
      %s192 = sphi 0, %s190
      %s193 = sphi 0, %s192
      %s207 = sphi 0, %s193
      %s211 = sphi 0, %s211
      %s213 = sphi 0, %s211
      %s214 = sphi 0, %s213
      %s228 = sphi 0, %s214
      %s232 = sphi 0, %s232
      %s234 = sphi 0, %s232
      %s235 = sphi 0, %s234
      %s249 = sphi 0, %s235
      %s257 = sphi 0, %s259
      %s260 = sphi 0, %s257
      %s261 = sphi 0, %s260
      %s277 = sphi 0, %s261
    $region4: #{tpu_custom_call.1} parent=1 // loop_header_branch
      %28 = sbr.rel (%p26) target = $region8
    $region5: #{tpu_custom_call.1} parent=1 // loop_body
      %s30 = ssub.s32 %s25, 1
      %s31 = ssub.s32 %s25, 2
      %s41 = sadd.s32 1, %s34
      %p42 = scmp.ge.s32.totalorder %s41, 1
      %s43 = scalar_select %p42, 0, %s41
      %s44 = sadd.s32 1, %s33
      %s45 = scalar_select %p42, %s44, %s33
      %p46 = scmp.ge.s32.totalorder %s45, 1
      %s47 = scalar_select %p46, 0, %s45
      %s48 = sadd.s32 1, %s32
      %s49 = scalar_select %p46, %s48, %s32
      %p50 = scmp.ge.s32.totalorder %s49, 2
      %s51 = scalar_select %p50, 0, %s49
      %s52 = ssub.s32 %s32, %s51
      %s53 = ssub.s32 %s33, %s47
      %s54 = sor.u32 %s52, %s53
      %p55 = scmp.eq.s32.totalorder %s54, 0
      %s57 = sadd.s32 %s56, 1
      %s58 = scalar_select %p55, %s56, %s57
      %p61 = pneg %p55
      %p62 = scmp.eq.s32.totalorder %s25, 1
      %p63 = por %p61, %p62
      %p64 = scmp.ne.s32.totalorder %s56, %s59
      %p65 = scmp.eq.s32.totalorder %s25, 0
      %p66 = por %p64, %p65
      %p67 = scmp.ne.s32.totalorder %s56, %s59
      %p68 = scmp.eq.s32.totalorder %s30, 1
      %p69 = por %p67, %p68
      %p70 = scmp.ne.s32.totalorder %s59, %s60
      %p71 = scmp.eq.s32.totalorder %s30, 0
      %p72 = por %p70, %p71
      %p73 = scmp.ne.s32.totalorder %s59, %s60
      %p74 = scmp.eq.s32.totalorder %s31, 1
      %p75 = por %p73, %p74
      %p77 = scmp.ne.s32.totalorder %s60, %s76
      %p78 = scmp.eq.s32.totalorder %s31, 0
      %p79 = por %p77, %p78
      %s80 = ssub.s32 %s32, %s51
      %p81 = scmp.eq.s32.totalorder %s80, 0
      %s83 = sadd.s32 %s82, 1
      %s84 = scalar_select %p81, %s82, %s83
      %p87 = pneg %p81
      %p88 = scmp.eq.s32.totalorder %s25, 1
      %p89 = por %p87, %p88
      %p90 = scmp.ne.s32.totalorder %s82, %s85
      %p91 = scmp.eq.s32.totalorder %s25, 0
      %p92 = por %p90, %p91
      %p93 = scmp.ne.s32.totalorder %s82, %s85
      %p94 = scmp.eq.s32.totalorder %s30, 1
      %p95 = por %p93, %p94
      %p96 = scmp.ne.s32.totalorder %s85, %s86
      %p97 = scmp.eq.s32.totalorder %s30, 0
      %p98 = por %p96, %p97
      %p99 = scmp.ne.s32.totalorder %s85, %s86
      %p100 = scmp.eq.s32.totalorder %s31, 1
      %p101 = por %p99, %p100
      %p103 = scmp.ne.s32.totalorder %s86, %s102
      %p104 = scmp.eq.s32.totalorder %s31, 0
      %p105 = por %p103, %p104
      %s107 = sadd.s32 %s106, 1
      %p110 = scmp.eq.s32.totalorder %s25, 1
      %p111 = scmp.ne.s32.totalorder %s106, %s108
      %p112 = scmp.eq.s32.totalorder %s25, 0
      %p113 = por %p111, %p112
      %p114 = scmp.ne.s32.totalorder %s106, %s108
      %p115 = scmp.eq.s32.totalorder %s30, 1
      %p116 = por %p114, %p115
      %p117 = scmp.ne.s32.totalorder %s108, %s109
      %p118 = scmp.eq.s32.totalorder %s30, 0
      %p119 = por %p117, %p118
      %p120 = scmp.ne.s32.totalorder %s108, %s109
      %p121 = scmp.eq.s32.totalorder %s31, 1
      %p122 = por %p120, %p121
      %p124 = scmp.ne.s32.totalorder %s109, %s123
      %p125 = scmp.eq.s32.totalorder %s31, 0
      %p126 = por %p124, %p125
      %s128 = sadd.s32 %s127, 1
      %p131 = scmp.eq.s32.totalorder %s25, 1
      %p132 = scmp.ne.s32.totalorder %s127, %s129
      %p133 = scmp.eq.s32.totalorder %s25, 0
      %p134 = por %p132, %p133
      %p135 = scmp.ne.s32.totalorder %s127, %s129
      %p136 = scmp.eq.s32.totalorder %s30, 1
      %p137 = por %p135, %p136
      %p138 = scmp.ne.s32.totalorder %s129, %s130
      %p139 = scmp.eq.s32.totalorder %s30, 0
      %p140 = por %p138, %p139
      %p141 = scmp.ne.s32.totalorder %s129, %s130
      %p142 = scmp.eq.s32.totalorder %s31, 1
      %p143 = por %p141, %p142
      %p145 = scmp.ne.s32.totalorder %s130, %s144
      %p146 = scmp.eq.s32.totalorder %s31, 0
      %p147 = por %p145, %p146
      %s149 = sadd.s32 %s148, 1
      %p152 = scmp.eq.s32.totalorder %s25, 1
      %p153 = scmp.ne.s32.totalorder %s148, %s150
      %p154 = scmp.eq.s32.totalorder %s25, 0
      %p155 = por %p153, %p154
      %p156 = scmp.ne.s32.totalorder %s148, %s150
      %p157 = scmp.eq.s32.totalorder %s30, 1
      %p158 = por %p156, %p157
      %p159 = scmp.ne.s32.totalorder %s150, %s151
      %p160 = scmp.eq.s32.totalorder %s30, 0
      %p161 = por %p159, %p160
      %p162 = scmp.ne.s32.totalorder %s150, %s151
      %p163 = scmp.eq.s32.totalorder %s31, 1
      %p164 = por %p162, %p163
      %p166 = scmp.ne.s32.totalorder %s151, %s165
      %p167 = scmp.eq.s32.totalorder %s31, 0
      %p168 = por %p166, %p167
      %s170 = sadd.s32 %s169, 1
      %p173 = scmp.eq.s32.totalorder %s25, 1
      %p174 = scmp.ne.s32.totalorder %s169, %s171
      %p175 = scmp.eq.s32.totalorder %s25, 0
      %p176 = por %p174, %p175
      %p177 = scmp.ne.s32.totalorder %s169, %s171
      %p178 = scmp.eq.s32.totalorder %s30, 1
      %p179 = por %p177, %p178
      %p180 = scmp.ne.s32.totalorder %s171, %s172
      %p181 = scmp.eq.s32.totalorder %s30, 0
      %p182 = por %p180, %p181
      %p183 = scmp.ne.s32.totalorder %s171, %s172
      %p184 = scmp.eq.s32.totalorder %s31, 1
      %p185 = por %p183, %p184
      %p187 = scmp.ne.s32.totalorder %s172, %s186
      %p188 = scmp.eq.s32.totalorder %s31, 0
      %p189 = por %p187, %p188
      %s191 = sadd.s32 %s190, 1
      %p194 = scmp.eq.s32.totalorder %s25, 1
      %p195 = scmp.ne.s32.totalorder %s190, %s192
      %p196 = scmp.eq.s32.totalorder %s25, 0
      %p197 = por %p195, %p196
      %p198 = scmp.ne.s32.totalorder %s190, %s192
      %p199 = scmp.eq.s32.totalorder %s30, 1
      %p200 = por %p198, %p199
      %p201 = scmp.ne.s32.totalorder %s192, %s193
      %p202 = scmp.eq.s32.totalorder %s30, 0
      %p203 = por %p201, %p202
      %p204 = scmp.ne.s32.totalorder %s192, %s193
      %p205 = scmp.eq.s32.totalorder %s31, 1
      %p206 = por %p204, %p205
      %p208 = scmp.ne.s32.totalorder %s193, %s207
      %p209 = scmp.eq.s32.totalorder %s31, 0
      %p210 = por %p208, %p209
      %s212 = sadd.s32 %s211, 1
      %p215 = scmp.eq.s32.totalorder %s25, 1
      %p216 = scmp.ne.s32.totalorder %s211, %s213
      %p217 = scmp.eq.s32.totalorder %s25, 0
      %p218 = por %p216, %p217
      %p219 = scmp.ne.s32.totalorder %s211, %s213
      %p220 = scmp.eq.s32.totalorder %s30, 1
      %p221 = por %p219, %p220
      %p222 = scmp.ne.s32.totalorder %s213, %s214
      %p223 = scmp.eq.s32.totalorder %s30, 0
      %p224 = por %p222, %p223
      %p225 = scmp.ne.s32.totalorder %s213, %s214
      %p226 = scmp.eq.s32.totalorder %s31, 1
      %p227 = por %p225, %p226
      %p229 = scmp.ne.s32.totalorder %s214, %s228
      %p230 = scmp.eq.s32.totalorder %s31, 0
      %p231 = por %p229, %p230
      %s233 = sadd.s32 %s232, 1
      %p236 = scmp.eq.s32.totalorder %s25, 1
      %p237 = scmp.ne.s32.totalorder %s232, %s234
      %p238 = scmp.eq.s32.totalorder %s25, 0
      %p239 = por %p237, %p238
      %p240 = scmp.ne.s32.totalorder %s232, %s234
      %p241 = scmp.eq.s32.totalorder %s30, 1
      %p242 = por %p240, %p241
      %p243 = scmp.ne.s32.totalorder %s234, %s235
      %p244 = scmp.eq.s32.totalorder %s30, 0
      %p245 = por %p243, %p244
      %p246 = scmp.ne.s32.totalorder %s234, %s235
      %p247 = scmp.eq.s32.totalorder %s31, 1
      %p248 = por %p246, %p247
      %p250 = scmp.ne.s32.totalorder %s235, %s249
      %p251 = scmp.eq.s32.totalorder %s31, 0
      %p252 = por %p250, %p251
      %s253 = ssub.s32 %s32, %s51
      %s254 = ssub.s32 %s33, %s47
      %s255 = sor.u32 %s253, %s254
      %p256 = scmp.eq.s32.totalorder %s255, 0
      %s258 = sadd.s32 %s257, 1
      %s259 = scalar_select %p256, %s257, %s258
      %p262 = pneg %p256
      %p263 = scmp.eq.s32.totalorder %s25, 1
      %p264 = por %p262, %p263
      %p265 = scmp.ne.s32.totalorder %s257, %s260
      %p266 = scmp.eq.s32.totalorder %s25, 0
      %p267 = por %p265, %p266
      %p268 = scmp.ne.s32.totalorder %s257, %s260
      %p269 = scmp.eq.s32.totalorder %s30, 1
      %p270 = por %p268, %p269
      %p271 = scmp.ne.s32.totalorder %s260, %s261
      %p272 = scmp.eq.s32.totalorder %s30, 0
      %p273 = por %p271, %p272
      %p274 = scmp.ne.s32.totalorder %s260, %s261
      %p275 = scmp.eq.s32.totalorder %s31, 1
      %p276 = por %p274, %p275
      %p278 = scmp.ne.s32.totalorder %s261, %s277
      %p279 = scmp.eq.s32.totalorder %s31, 0
      %p280 = por %p278, %p279
      %p281 = scmp.le.s32.totalorder 1, %s25
      %p282 = scmp.lt.s32.totalorder %s25, 3
      %p283 = pnand %p281, %p282
      %p284 = pneg %p283
      // Predicated region
      $region9: #{tpu_custom_call.1} parent=5 // pred_check
        _
      $region10: #{tpu_custom_call.1} parent=5 // pred_check_branch
        %286 = sbr.rel (%p283) target = $region12
      $region11: #{tpu_custom_call.1} parent=5 // pred_region
        %s287 = ssub.s32 %s25, 1
        // Predicated region
        $region13: #{tpu_custom_call.1} parent=11 // pred_check
          %p288 = pneg %p119
        $region14: #{tpu_custom_call.1} parent=11 // pred_check_branch
          %290 = sbr.rel (%p288) target = $region16
        $region15: #{tpu_custom_call.1} parent=11 // pred_region
          %s292 = ssub.s32 256, 256
          %293 = vsyncadd [#allocation9], %s292
          %s294 = sshll.u32 [#allocation10], 4
          %s295 = int_to_ptr.vmem [resolvable:$true] %s294
          %300 = dma.hbm_to_vmem [thread:$0]  %s2, 256, %s295, [#allocation9], 64, 64, 4
        $region16: #{tpu_custom_call.1} parent=11 // pred_fallthru
          _
        // Predicated region
        $region17: #{tpu_custom_call.1} parent=11 // pred_check
          %p301 = pneg %p140
        $region18: #{tpu_custom_call.1} parent=11 // pred_check_branch
          %303 = sbr.rel (%p301) target = $region20
        $region19: #{tpu_custom_call.1} parent=11 // pred_region
          _
        $region20: #{tpu_custom_call.1} parent=11 // pred_fallthru
          _
        // Predicated region
        $region21: #{tpu_custom_call.1} parent=11 // pred_check
          %p304 = pneg %p161
        $region22: #{tpu_custom_call.1} parent=11 // pred_check_branch
          %306 = sbr.rel (%p304) target = $region24
        $region23: #{tpu_custom_call.1} parent=11 // pred_region
          %s308 = ssub.s32 256, 256
          %309 = vsyncadd [#allocation12], %s308
          %s310 = sshll.u32 [#allocation11], 4
          %s311 = int_to_ptr.vmem [resolvable:$true] %s310
          %316 = dma.hbm_to_vmem [thread:$0]  %s4, 256, %s311, [#allocation12], 64, 64, 4
        $region24: #{tpu_custom_call.1} parent=11 // pred_fallthru
          _
        // Predicated region
        $region25: #{tpu_custom_call.1} parent=11 // pred_check
          %p317 = pneg %p182
        $region26: #{tpu_custom_call.1} parent=11 // pred_check_branch
          %319 = sbr.rel (%p317) target = $region28
        $region27: #{tpu_custom_call.1} parent=11 // pred_region
          _
        $region28: #{tpu_custom_call.1} parent=11 // pred_fallthru
          _
        // Predicated region
        $region29: #{tpu_custom_call.1} parent=11 // pred_check
          %p320 = pneg %p203
        $region30: #{tpu_custom_call.1} parent=11 // pred_check_branch
          %322 = sbr.rel (%p320) target = $region32
        $region31: #{tpu_custom_call.1} parent=11 // pred_region
          _
        $region32: #{tpu_custom_call.1} parent=11 // pred_fallthru
          _
        // Predicated region
        $region33: #{tpu_custom_call.1} parent=11 // pred_check
          %p323 = pneg %p224
        $region34: #{tpu_custom_call.1} parent=11 // pred_check_branch
          %325 = sbr.rel (%p323) target = $region36
        $region35: #{tpu_custom_call.1} parent=11 // pred_region
          %s327 = ssub.s32 256, 256
          %328 = vsyncadd [#allocation12], %s327
          %s329 = sshll.u32 [#allocation13], 4
          %s330 = int_to_ptr.vmem [resolvable:$true] %s329
          %335 = dma.hbm_to_vmem [thread:$0]  %s7, 256, %s330, [#allocation12], 64, 64, 4
        $region36: #{tpu_custom_call.1} parent=11 // pred_fallthru
          _
        // Predicated region
        $region37: #{tpu_custom_call.1} parent=11 // pred_check
          %p336 = pneg %p245
        $region38: #{tpu_custom_call.1} parent=11 // pred_check_branch
          %338 = sbr.rel (%p336) target = $region40
        $region39: #{tpu_custom_call.1} parent=11 // pred_region
          _
        $region40: #{tpu_custom_call.1} parent=11 // pred_fallthru
          _
      $region12: #{tpu_custom_call.1} parent=5 // pred_fallthru
        _
      %p339 = scmp.lt.s32.totalorder %s25, 2
      // Predicated region
      $region41: #{tpu_custom_call.1} parent=5 // pred_check
        %p340 = pneg %p339
      $region42: #{tpu_custom_call.1} parent=5 // pred_check_branch
        %342 = sbr.rel (%p340) target = $region44
      $region43: #{tpu_custom_call.1} parent=5 // pred_region
        // Predicated region
        $region45: #{tpu_custom_call.1} parent=43 // pred_check
          %p343 = pneg %p66
        $region46: #{tpu_custom_call.1} parent=43 // pred_check_branch
          %345 = sbr.rel (%p343) target = $region48
        $region47: #{tpu_custom_call.1} parent=43 // pred_region
          %s346 = sand.u32 %s56, 1
          %s347 = scalar_lea.sflag [#allocation6], %s346
          %s348 = sand.u32 %s56, 1
          %s349 = smul.addr %s348, 8
          %s350 = scalar_lea.vmem [#allocation5], %s349
          %s351 = smul.u32 2, %s33
          %s353 = ssub.s32 128, 128
          %354 = vsyncadd %s347, %s353
          %s355 = smul.addr %s32, 2
          %s356 = sadd.s32 %s351, %s355
          %s357 = smul.addr %s356, 64
          %s358 = scalar_lea.hbm %s0, %s357
          %s359 = sshll.u32 %s350, 4
          %s360 = int_to_ptr.vmem [resolvable:$true] %s359
          %365 = dma.hbm_to_vmem [thread:$0]  %s358, 128, %s360, %s347, 64, 64, 4
        $region48: #{tpu_custom_call.1} parent=43 // pred_fallthru
          _
        // Predicated region
        $region49: #{tpu_custom_call.1} parent=43 // pred_check
          %p366 = pneg %p92
        $region50: #{tpu_custom_call.1} parent=43 // pred_check_branch
          %368 = sbr.rel (%p366) target = $region52
        $region51: #{tpu_custom_call.1} parent=43 // pred_region
          %s369 = sand.u32 %s25, 1
          %s370 = scalar_lea.sflag [#allocation9], %s369
          %s371 = sand.u32 %s82, 1
          %s372 = smul.addr %s371, 8
          %s373 = scalar_lea.vmem [#allocation8], %s372
          %s375 = ssub.s32 128, 128
          %376 = vsyncadd %s370, %s375
          %s377 = smul.addr %s32, 2
          %s378 = smul.addr %s377, 64
          %s379 = scalar_lea.hbm %s1, %s378
          %s380 = sshll.u32 %s373, 4
          %s381 = int_to_ptr.vmem [resolvable:$true] %s380
          %386 = dma.hbm_to_vmem [thread:$0]  %s379, 128, %s381, %s370, 64, 64, 4
        $region52: #{tpu_custom_call.1} parent=43 // pred_fallthru
          _
      $region44: #{tpu_custom_call.1} parent=5 // pred_fallthru
        _
      %p387 = scmp.le.s32.totalorder 1, %s25
      %p388 = scmp.lt.s32.totalorder %s25, 3
      %p389 = pnand %p387, %p388
      %p390 = pneg %p389
      // Predicated region
      $region53: #{tpu_custom_call.1} parent=5 // pred_check
        _
      $region54: #{tpu_custom_call.1} parent=5 // pred_check_branch
        %392 = sbr.rel (%p389) target = $region56
      $region55: #{tpu_custom_call.1} parent=5 // pred_region
        %s393 = ssub.s32 %s25, 1
        %s394 = sand.u32 %s59, 1
        %s395 = scalar_lea.sflag [#allocation6], %s394
        %s396 = sand.u32 %s59, 1
        %s397 = smul.addr %s396, 8
        %s398 = scalar_lea.vmem [#allocation5], %s397
        // Predicated region
        $region57: #{tpu_custom_call.1} parent=55 // pred_check
          %p399 = pneg %p72
        $region58: #{tpu_custom_call.1} parent=55 // pred_check_branch
          %401 = sbr.rel (%p399) target = $region60
        $region59: #{tpu_custom_call.1} parent=55 // pred_region
          %402 = dma.done %s395, 128
        $region60: #{tpu_custom_call.1} parent=55 // pred_fallthru
          _
        %s403 = sand.u32 %s30, 1
        %s404 = scalar_lea.sflag [#allocation9], %s403
        %s405 = sand.u32 %s85, 1
        %s406 = smul.addr %s405, 8
        %s407 = scalar_lea.vmem [#allocation8], %s406
        // Predicated region
        $region61: #{tpu_custom_call.1} parent=55 // pred_check
          %p408 = pneg %p98
        $region62: #{tpu_custom_call.1} parent=55 // pred_check_branch
          %410 = sbr.rel (%p408) target = $region64
        $region63: #{tpu_custom_call.1} parent=55 // pred_region
          %411 = dma.done %s404, 128
        $region64: #{tpu_custom_call.1} parent=55 // pred_fallthru
          _
        // Predicated region
        $region65: #{tpu_custom_call.1} parent=55 // pred_check
          %p412 = pneg %p119
        $region66: #{tpu_custom_call.1} parent=55 // pred_check_branch
          %414 = sbr.rel (%p412) target = $region68
        $region67: #{tpu_custom_call.1} parent=55 // pred_region
          %415 = dma.done [#allocation9], 256
        $region68: #{tpu_custom_call.1} parent=55 // pred_fallthru
          _
        // Predicated region
        $region69: #{tpu_custom_call.1} parent=55 // pred_check
          %p416 = pneg %p161
        $region70: #{tpu_custom_call.1} parent=55 // pred_check_branch
          %418 = sbr.rel (%p416) target = $region72
        $region71: #{tpu_custom_call.1} parent=55 // pred_region
          %419 = dma.done [#allocation12], 256
        $region72: #{tpu_custom_call.1} parent=55 // pred_fallthru
          _
        // Predicated region
        $region73: #{tpu_custom_call.1} parent=55 // pred_check
          %p420 = pneg %p224
        $region74: #{tpu_custom_call.1} parent=55 // pred_check_branch
          %422 = sbr.rel (%p420) target = $region76
        $region75: #{tpu_custom_call.1} parent=55 // pred_region
          %423 = dma.done [#allocation12], 256
        $region76: #{tpu_custom_call.1} parent=55 // pred_fallthru
          _
        %s424 = sand.u32 %s59, 1
        %s425 = scalar_lea.sflag [#allocation6], %s424
        %s426 = sand.u32 %s59, 1
        %s427 = smul.addr %s426, 8
        %s428 = scalar_lea.vmem [#allocation5], %s427
        %p429 = pneg %p72
        %p430 = pneg %p69
        %s431 = sand.u32 %s30, 1
        %s432 = scalar_lea.sflag [#allocation9], %s431
        %s433 = sand.u32 %s85, 1
        %s434 = smul.addr %s433, 8
        %s435 = scalar_lea.vmem [#allocation8], %s434
        %p436 = pneg %p98
        %p437 = pneg %p95
        %p438 = pneg %p119
        %p439 = pneg %p116
        %p440 = pneg %p140
        %p441 = pneg %p137
        %p442 = pneg %p161
        %p443 = pneg %p158
        %p444 = pneg %p182
        %p445 = pneg %p179
        %p446 = pneg %p203
        %p447 = pneg %p200
        %p448 = pneg %p224
        %p449 = pneg %p221
        %p450 = pneg %p245
        %p451 = pneg %p242
        %p452 = pneg %p273
        %p453 = pneg %p270
        %s454 = sand.u32 %s260, 1
        %s455 = scalar_lea.sflag [#allocation7], %s454
        %s456 = sand.u32 %s260, 1
        %s457 = smul.addr %s456, 16
        %s458 = scalar_lea.vmem [#allocation14], %s457
        %s459 = smul.u32 2, %s36
        %s460 = smul.u32 2, %s36
        %p462 = scmp.eq.s32.totalorder %s36, 0
        // Predicated region
        $region77: #{tpu_custom_call.1} parent=55 // pred_check
          %p463 = pneg %p462
        $region78: #{tpu_custom_call.1} parent=55 // pred_check_branch
          %465 = sbr.rel (%p463) target = $region80
        $region79: #{tpu_custom_call.1} parent=55 // pred_region
          %v466 = vld [vmem:[%s407] sm:$0xf]
          %v467 = vld [vmem:[%s407 + $0x4] sm:$0xf]
          %s468 = smul.u32 %s37, 4
          %s469 = smul.addr %s468, 4
          %s470 = scalar_lea.vmem [#allocation11], %s469
          %v471 = vld [vmem:[%s470] sm:$0xf]
          %v472 = vld [vmem:[%s470 + $0x4] sm:$0xf]
          %v473 = vld [vmem:[%s470 + $0x8] sm:$0xf]
          %v474 = vld [vmem:[%s470 + $0xc] sm:$0xf]
          %v477 = vunpack.c.l.b16 %v466
          %v478 = vunpack.c.l.b16 %v467
          %v479 = vpack.c.b16 %v478, %v477
          %v484 = vunpack.c.l.b16 %v471
          %v485 = vunpack.c.l.b16 %v472
          %v486 = vunpack.c.l.b16 %v473
          %v487 = vunpack.c.l.b16 %v474
          %v488 = vpack.c.b16 %v485, %v484
          %v489 = vpack.c.b16 %v487, %v486
          %vm492 = vcmask 261120
          %v494 = vsel %vm492, %v479, 0
          %496 = vmatprep.subr.bf16.mxu0 0
          %497 = vmatpush1.bf16.msra.mxu0 %v488
          %498 = vmatprep.subr.bf16.mxu0 0
          %499 = vmatpush1.bf16.msra.mxu0 %v489
          %500 = vmatprep.subr.bf16.mxu0 0
          %501 = vmatpush1.bf16.msra.mxu0 0
          %502 = vmatprep.subr.bf16.mxu0 0
          %503 = vmatpush1.bf16.msra.mxu0 0
          %504 = vmatprep.subr.bf16.mxu0 0
          %505 = vmatpush1.bf16.msra.mxu0 0
          %506 = vmatprep.subr.bf16.mxu0 0
          %507 = vmatpush1.bf16.msra.mxu0 0
          %508 = vmatprep.subr.bf16.mxu0 0
          %509 = vmatpush1.bf16.msra.mxu0 0
          %510 = vmatprep.subr.bf16.mxu0 0
          %511 = vmatpush1.bf16.msra.mxu0 0
          %512 = vmatprep.subr.bf16.mxu0 0
          %513 = vmatpush1.bf16.msra.mxu0 0
          %514 = vmatprep.subr.bf16.mxu0 0
          %515 = vmatpush1.bf16.msra.mxu0 0
          %516 = vmatprep.subr.bf16.mxu0 0
          %517 = vmatpush1.bf16.msra.mxu0 0
          %518 = vmatprep.subr.bf16.mxu0 0
          %519 = vmatpush1.bf16.msra.mxu0 0
          %520 = vmatprep.subr.bf16.mxu0 0
          %521 = vmatpush1.bf16.msra.mxu0 0
          %522 = vmatprep.subr.bf16.mxu0 0
          %523 = vmatpush1.bf16.msra.mxu0 0
          %524 = vmatprep.subr.bf16.mxu0 0
          %525 = vmatpush1.bf16.msra.mxu0 0
          %526 = vmatprep.subr.bf16.mxu0 0
          %527 = vmatpush1.bf16.msra.mxu0 0
          %528 = vmatprep.mubr.bf16.mxu0 0
          %529 = vmatmul.mubr.bf16.gmra.mrb[0].mxu0 %v494
          %v530 = vpop.f32.mrb[0].mxu0
          %v531 = vadd.f32 0.0, %v530
          %v532 = vpop.f32.mrb[0].mxu0
          %v533 = vpop.f32.mrb[0].mxu0
          %v534 = vadd.f32 0.0, %v533
          %v535 = vpop.f32.mrb[0].mxu0
          %536 = vdwg.mxu0
          %s537 = smul.addr %s468, 4
          %s538 = scalar_lea.vmem %s5, %s537
          %v539 = vld [vmem:[%s538] sm:$0xf]
          %v540 = vld [vmem:[%s538 + $0x4] sm:$0xf]
          %v541 = vld [vmem:[%s538 + $0x8] sm:$0xf]
          %v542 = vld [vmem:[%s538 + $0xc] sm:$0xf]
          %s543 = scalar_lea.vmem %s6, %s37
          %v544 = vld [vmem:[%s543] sm:$0x1]
          %v546 = vlaneseq
          %v547 = vshrl.u32 %v546, 7
          %v548 = vsub.s32 0, %v547
          %v549 = vrot.slane %v544, %v548
          %v555 = vunpack.c.l.b16 %v539
          %v556 = vunpack.c.l.b16 %v540
          %v557 = vunpack.c.l.b16 %v541
          %v558 = vunpack.c.l.b16 %v542
          %v559 = vpack.c.b16 %v556, %v555
          %v560 = vpack.c.b16 %v558, %v557
          %563 = vmatprep.subr.bf16.mxu0 0
          %564 = vmatpush1.bf16.msra.mxu0 %v559
          %565 = vmatprep.subr.bf16.mxu0 0
          %566 = vmatpush1.bf16.msra.mxu0 %v560
          %567 = vmatprep.subr.bf16.mxu0 0
          %568 = vmatpush1.bf16.msra.mxu0 0
          %569 = vmatprep.subr.bf16.mxu0 0
          %570 = vmatpush1.bf16.msra.mxu0 0
          %571 = vmatprep.subr.bf16.mxu0 0
          %572 = vmatpush1.bf16.msra.mxu0 0
          %573 = vmatprep.subr.bf16.mxu0 0
          %574 = vmatpush1.bf16.msra.mxu0 0
          %575 = vmatprep.subr.bf16.mxu0 0
          %576 = vmatpush1.bf16.msra.mxu0 0
          %577 = vmatprep.subr.bf16.mxu0 0
          %578 = vmatpush1.bf16.msra.mxu0 0
          %579 = vmatprep.subr.bf16.mxu0 0
          %580 = vmatpush1.bf16.msra.mxu0 0
          %581 = vmatprep.subr.bf16.mxu0 0
          %582 = vmatpush1.bf16.msra.mxu0 0
          %583 = vmatprep.subr.bf16.mxu0 0
          %584 = vmatpush1.bf16.msra.mxu0 0
          %585 = vmatprep.subr.bf16.mxu0 0
          %586 = vmatpush1.bf16.msra.mxu0 0
          %587 = vmatprep.subr.bf16.mxu0 0
          %588 = vmatpush1.bf16.msra.mxu0 0
          %589 = vmatprep.subr.bf16.mxu0 0
          %590 = vmatpush1.bf16.msra.mxu0 0
          %591 = vmatprep.subr.bf16.mxu0 0
          %592 = vmatpush1.bf16.msra.mxu0 0
          %593 = vmatprep.subr.bf16.mxu0 0
          %594 = vmatpush1.bf16.msra.mxu0 0
          %595 = vmatprep.mubr.bf16.mxu0 0
          %596 = vmatmul.mubr.bf16.gmra.mrb[0].mxu0 %v494
          %v597 = vpop.f32.mrb[0].mxu0
          %v598 = vadd.f32 %v549, %v597
          %v599 = vpop.f32.mrb[0].mxu0
          %v600 = vpop.f32.mrb[0].mxu0
          %v601 = vadd.f32 %v549, %v600
          %v602 = vpop.f32.mrb[0].mxu0
          %603 = vdwg.mxu0
          %v604 = vpack.c.bf16 %v534, %v531
          %s605 = smul.addr %s37, 8
          %s606 = scalar_lea.vmem [#allocation2], %s605
          %607 = vst.msk [vmem:[%s606] sm:$0xff] %vm492, %v604
          %v608 = vpack.c.bf16 %v601, %v598
          %s609 = smul.addr %s37, 8
          %s610 = scalar_lea.vmem [#allocation3], %s609
          %611 = vst.msk [vmem:[%s610] sm:$0xff] %vm492, %v608
        $region80: #{tpu_custom_call.1} parent=55 // pred_fallthru
          _
        %s612 = smul.addr %s37, 8
        %s613 = scalar_lea.vmem [#allocation2], %s612
        %v614 = vld [vmem:[%s613] sm:$0xff]
        %s615 = smul.addr %s37, 8
        %s616 = scalar_lea.vmem [#allocation3], %s615
        %v617 = vld [vmem:[%s616] sm:$0xff]
        %v618 = vld [vmem:[%s398] sm:$0xf]
        %v619 = vld [vmem:[%s398 + $0x4] sm:$0xf]
        %s620 = smul.u32 %s37, 4
        %s621 = smul.addr %s620, 4
        %s622 = scalar_lea.vmem [#allocation10], %s621
        %v623 = vld [vmem:[%s622] sm:$0xf]
        %v624 = vld [vmem:[%s622 + $0x4] sm:$0xf]
        %v625 = vld [vmem:[%s622 + $0x8] sm:$0xf]
        %v626 = vld [vmem:[%s622 + $0xc] sm:$0xf]
        %s627 = scalar_lea.vmem %s3, %s37
        %v628 = vld [vmem:[%s627] sm:$0x1]
        %v630 = vlaneseq
        %v631 = vshrl.u32 %v630, 7
        %v632 = vsub.s32 0, %v631
        %v633 = vrot.slane %v628, %v632
        %v637 = vunpack.c.l.b16 %v618
        %v638 = vunpack.c.l.b16 %v619
        %v639 = vpack.c.b16 %v638, %v637
        %v644 = vunpack.c.l.b16 %v623
        %v645 = vunpack.c.l.b16 %v624
        %v646 = vunpack.c.l.b16 %v625
        %v647 = vunpack.c.l.b16 %v626
        %v648 = vpack.c.b16 %v645, %v644
        %v649 = vpack.c.b16 %v647, %v646
        %vm652 = vcmask 261120
        %v654 = vsel %vm652, %v639, 0
        %656 = vmatprep.subr.bf16.mxu0 0
        %657 = vmatpush1.bf16.msra.mxu0 %v648
        %658 = vmatprep.subr.bf16.mxu0 0
        %659 = vmatpush1.bf16.msra.mxu0 %v649
        %660 = vmatprep.subr.bf16.mxu0 0
        %661 = vmatpush1.bf16.msra.mxu0 0
        %662 = vmatprep.subr.bf16.mxu0 0
        %663 = vmatpush1.bf16.msra.mxu0 0
        %664 = vmatprep.subr.bf16.mxu0 0
        %665 = vmatpush1.bf16.msra.mxu0 0
        %666 = vmatprep.subr.bf16.mxu0 0
        %667 = vmatpush1.bf16.msra.mxu0 0
        %668 = vmatprep.subr.bf16.mxu0 0
        %669 = vmatpush1.bf16.msra.mxu0 0
        %670 = vmatprep.subr.bf16.mxu0 0
        %671 = vmatpush1.bf16.msra.mxu0 0
        %672 = vmatprep.subr.bf16.mxu0 0
        %673 = vmatpush1.bf16.msra.mxu0 0
        %674 = vmatprep.subr.bf16.mxu0 0
        %675 = vmatpush1.bf16.msra.mxu0 0
        %676 = vmatprep.subr.bf16.mxu0 0
        %677 = vmatpush1.bf16.msra.mxu0 0
        %678 = vmatprep.subr.bf16.mxu0 0
        %679 = vmatpush1.bf16.msra.mxu0 0
        %680 = vmatprep.subr.bf16.mxu0 0
        %681 = vmatpush1.bf16.msra.mxu0 0
        %682 = vmatprep.subr.bf16.mxu0 0
        %683 = vmatpush1.bf16.msra.mxu0 0
        %684 = vmatprep.subr.bf16.mxu0 0
        %685 = vmatpush1.bf16.msra.mxu0 0
        %686 = vmatprep.subr.bf16.mxu0 0
        %687 = vmatpush1.bf16.msra.mxu0 0
        %688 = vmatprep.mubr.bf16.mxu0 0
        %689 = vmatmul.mubr.bf16.gmra.mrb[0].mxu0 %v654
        %v690 = vpop.f32.mrb[0].mxu0
        %v691 = vadd.f32 %v633, %v690
        %v692 = vpop.f32.mrb[0].mxu0
        %v693 = vpop.f32.mrb[0].mxu0
        %v694 = vadd.f32 %v633, %v693
        %v695 = vpop.f32.mrb[0].mxu0
        %696 = vdwg.mxu0
        %v697 = vpack.c.bf16 %v694, %v691
        %p698 = scmp.eq.s32.totalorder %s37, 0
        // Predicated region
        $region81: #{tpu_custom_call.1} parent=55 // pred_check
          %p699 = pneg %p698
        $region82: #{tpu_custom_call.1} parent=55 // pred_check_branch
          %701 = sbr.rel (%p699) target = $region84
        $region83: #{tpu_custom_call.1} parent=55 // pred_region
          %702 = vst.msk [vmem:[#allocation4] sm:$0xff] %vm652, 0.0
          %703 = vst.msk [vmem:[#allocation4 + $0x8] sm:$0xff] %vm652, 0.0
        $region84: #{tpu_custom_call.1} parent=55 // pred_fallthru
          _
        %s704 = smul.addr %s620, 4
        %s705 = scalar_lea.vmem [#allocation13], %s704
        %v706 = vld [vmem:[%s705] sm:$0xf]
        %v707 = vld [vmem:[%s705 + $0x4] sm:$0xf]
        %v708 = vld [vmem:[%s705 + $0x8] sm:$0xf]
        %v709 = vld [vmem:[%s705 + $0xc] sm:$0xf]
        %vm710 = vcmask 64512
        %v712 = vsel %vm710, %v697, 0
        %v715 = vsel %vm710, %v614, 0
        %717 = vmatprep.subr.bf16.mxu0 0
        %718 = vmatpush1.bf16.xpose.msra.mxu0 %v715
        %719 = vmatprep.subr.bf16.mxu0 0
        %720 = vmatpush1.bf16.xpose.msra.mxu0 0
        %721 = vmatprep.subr.bf16.mxu0 0
        %722 = vmatpush1.bf16.xpose.msra.mxu0 0
        %723 = vmatprep.subr.bf16.mxu0 0
        %724 = vmatpush1.bf16.xpose.msra.mxu0 0
        %725 = vmatprep.subr.bf16.mxu0 0
        %726 = vmatpush1.bf16.xpose.msra.mxu0 0
        %727 = vmatprep.subr.bf16.mxu0 0
        %728 = vmatpush1.bf16.xpose.msra.mxu0 0
        %729 = vmatprep.subr.bf16.mxu0 0
        %730 = vmatpush1.bf16.xpose.msra.mxu0 0
        %731 = vmatprep.subr.bf16.mxu0 0
        %732 = vmatpush1.bf16.xpose.msra.mxu0 0
        %733 = vmatprep.subr.bf16.mxu0 0
        %734 = vmatpush1.bf16.xpose.msra.mxu0 0
        %735 = vmatprep.subr.bf16.mxu0 0
        %736 = vmatpush1.bf16.xpose.msra.mxu0 0
        %737 = vmatprep.subr.bf16.mxu0 0
        %738 = vmatpush1.bf16.xpose.msra.mxu0 0
        %739 = vmatprep.subr.bf16.mxu0 0
        %740 = vmatpush1.bf16.xpose.msra.mxu0 0
        %741 = vmatprep.subr.bf16.mxu0 0
        %742 = vmatpush1.bf16.xpose.msra.mxu0 0
        %743 = vmatprep.subr.bf16.mxu0 0
        %744 = vmatpush1.bf16.xpose.msra.mxu0 0
        %745 = vmatprep.subr.bf16.mxu0 0
        %746 = vmatpush1.bf16.xpose.msra.mxu0 0
        %747 = vmatprep.subr.bf16.mxu0 0
        %748 = vmatpush1.bf16.xpose.msra.mxu0 0
        %749 = vmatprep.mubr.bf16.mxu0 0
        %750 = vmatmul.mubr.bf16.gmra.mrb[0].mxu0 %v712
        %v751 = vpop.f32.mrb[0].mxu0
        %v752 = vadd.f32 0.0, %v751
        %v753 = vpop.f32.mrb[0].mxu0
        %v754 = vpop.f32.mrb[0].mxu0
        %v755 = vadd.f32 0.0, %v754
        %v756 = vpop.f32.mrb[0].mxu0
        %757 = vdwg.mxu0
        %vm758 = vcmask 130048
        %v759 = vsel %vm758, %v752, -inf
        %760 = vmax.xlane.f32.xlu0 %v759
        %v761 = vpop.xlane.xlu0 %760
        %v762 = vsel %vm758, %v755, -inf
        %763 = vmax.xlane.f32.xlu0 %v762
        %v764 = vpop.xlane.xlu0 %763
        %v765 = vsub.f32 %v752, %v761
        %v766 = vsub.f32 %v755, %v764
        %v767 = vmul.f32 %v765, 1.442695
        %v768 = vpow.pop %v767
        %v769 = vmul.f32 %v766, 1.442695
        %v770 = vpow.pop %v769
        %v771 = vsel %vm758, %v768, 0.0
        %772 = vadd.xlane.f32.xlu0 %v771
        %v773 = vpop.xlane.xlu0 %772
        %v774 = vsel %vm758, %v770, 0.0
        %775 = vadd.xlane.f32.xlu0 %v774
        %v776 = vpop.xlane.xlu0 %775
        %v777 = vrcp.pop %v773
        %v778 = vrcp.pop %v776
        %v779 = vpack.c.bf16 %v770, %v768
        %v781 = vsel %vm758, %v779, 0
        %783 = vmatprep.subr.bf16.mxu0 0
        %784 = vmatpush1.bf16.msra.mxu0 %v617
        %785 = vmatprep.subr.bf16.mxu0 0
        %786 = vmatpush1.bf16.msra.mxu0 0
        %787 = vmatprep.subr.bf16.mxu0 0
        %788 = vmatpush1.bf16.msra.mxu0 0
        %789 = vmatprep.subr.bf16.mxu0 0
        %790 = vmatpush1.bf16.msra.mxu0 0
        %791 = vmatprep.subr.bf16.mxu0 0
        %792 = vmatpush1.bf16.msra.mxu0 0
        %793 = vmatprep.subr.bf16.mxu0 0
        %794 = vmatpush1.bf16.msra.mxu0 0
        %795 = vmatprep.subr.bf16.mxu0 0
        %796 = vmatpush1.bf16.msra.mxu0 0
        %797 = vmatprep.subr.bf16.mxu0 0
        %798 = vmatpush1.bf16.msra.mxu0 0
        %799 = vmatprep.subr.bf16.mxu0 0
        %800 = vmatpush1.bf16.msra.mxu0 0
        %801 = vmatprep.subr.bf16.mxu0 0
        %802 = vmatpush1.bf16.msra.mxu0 0
        %803 = vmatprep.subr.bf16.mxu0 0
        %804 = vmatpush1.bf16.msra.mxu0 0
        %805 = vmatprep.subr.bf16.mxu0 0
        %806 = vmatpush1.bf16.msra.mxu0 0
        %807 = vmatprep.subr.bf16.mxu0 0
        %808 = vmatpush1.bf16.msra.mxu0 0
        %809 = vmatprep.subr.bf16.mxu0 0
        %810 = vmatpush1.bf16.msra.mxu0 0
        %811 = vmatprep.subr.bf16.mxu0 0
        %812 = vmatpush1.bf16.msra.mxu0 0
        %813 = vmatprep.subr.bf16.mxu0 0
        %814 = vmatpush1.bf16.msra.mxu0 0
        %815 = vmatprep.mubr.bf16.mxu0 0
        %816 = vmatmul.mubr.bf16.gmra.mrb[0].mxu0 %v781
        %v817 = vpop.f32.mrb[0].mxu0
        %v818 = vadd.f32 0.0, %v817
        %v819 = vpop.f32.mrb[0].mxu0
        %v820 = vpop.f32.mrb[0].mxu0
        %v821 = vadd.f32 0.0, %v820
        %v822 = vpop.f32.mrb[0].mxu0
        %823 = vdwg.mxu0
        %v824 = vmul.f32 %v818, %v777
        %v825 = vmul.f32 %v821, %v778
        %v826 = vpack.c.bf16 %v825, %v824
        %v827 = vld [vmem:[#allocation4] sm:$0xff]
        %v828 = vld [vmem:[#allocation4 + $0x8] sm:$0xff]
        %v830 = vsel %vm710, %v826, 0
        %vm832 = vcmask 1043456
        %v834 = vsel %vm832, %v706, 0
        %836 = vmatprep.subr.bf16.mxu0 0
        %837 = vmatpush1.bf16.msra.mxu0 %v834
        %838 = vmatprep.subr.bf16.mxu0 0
        %839 = vmatpush1.bf16.msra.mxu0 0
        %840 = vmatprep.subr.bf16.mxu0 0
        %841 = vmatpush1.bf16.msra.mxu0 0
        %842 = vmatprep.subr.bf16.mxu0 0
        %843 = vmatpush1.bf16.msra.mxu0 0
        %844 = vmatprep.subr.bf16.mxu0 0
        %845 = vmatpush1.bf16.msra.mxu0 0
        %846 = vmatprep.subr.bf16.mxu0 0
        %847 = vmatpush1.bf16.msra.mxu0 0
        %848 = vmatprep.subr.bf16.mxu0 0
        %849 = vmatpush1.bf16.msra.mxu0 0
        %850 = vmatprep.subr.bf16.mxu0 0
        %851 = vmatpush1.bf16.msra.mxu0 0
        %852 = vmatprep.subr.bf16.mxu0 0
        %853 = vmatpush1.bf16.msra.mxu0 0
        %854 = vmatprep.subr.bf16.mxu0 0
        %855 = vmatpush1.bf16.msra.mxu0 0
        %856 = vmatprep.subr.bf16.mxu0 0
        %857 = vmatpush1.bf16.msra.mxu0 0
        %858 = vmatprep.subr.bf16.mxu0 0
        %859 = vmatpush1.bf16.msra.mxu0 0
        %860 = vmatprep.subr.bf16.mxu0 0
        %861 = vmatpush1.bf16.msra.mxu0 0
        %862 = vmatprep.subr.bf16.mxu0 0
        %863 = vmatpush1.bf16.msra.mxu0 0
        %864 = vmatprep.subr.bf16.mxu0 0
        %865 = vmatpush1.bf16.msra.mxu0 0
        %866 = vmatprep.subr.bf16.mxu0 0
        %867 = vmatpush1.bf16.msra.mxu0 0
        %868 = vmatprep.mubr.bf16.mxu0 0
        %869 = vmatmul.mubr.bf16.gmra.mrb[0].mxu0 %v830
        %v870 = vpop.f32.mrb[0].mxu0
        %v871 = vadd.f32 0.0, %v870
        %v872 = vpop.f32.mrb[0].mxu0
        %v873 = vpop.f32.mrb[0].mxu0
        %v874 = vadd.f32 0.0, %v873
        %v875 = vpop.f32.mrb[0].mxu0
        %876 = vdwg.mxu0
        %v877 = vadd.f32 %v827, %v871
        %v878 = vadd.f32 %v828, %v874
        %879 = vst.msk [vmem:[#allocation4] sm:$0xff] %vm652, %v877
        %880 = vst.msk [vmem:[#allocation4 + $0x8] sm:$0xff] %vm652, %v878
        %882 = vrot.lane.b32.xlu0 %v697, 120
        %v883 = vpop.permute.xlu0 %882
        %885 = vrot.lane.b32.xlu0 %v614, 120
        %v886 = vpop.permute.xlu0 %885
        %v888 = vsel %vm710, %v883, 0
        %v891 = vsel %vm710, %v886, 0
        %893 = vmatprep.subr.bf16.mxu0 0
        %894 = vmatpush1.bf16.xpose.msra.mxu0 %v891
        %895 = vmatprep.subr.bf16.mxu0 0
        %896 = vmatpush1.bf16.xpose.msra.mxu0 0
        %897 = vmatprep.subr.bf16.mxu0 0
        %898 = vmatpush1.bf16.xpose.msra.mxu0 0
        %899 = vmatprep.subr.bf16.mxu0 0
        %900 = vmatpush1.bf16.xpose.msra.mxu0 0
        %901 = vmatprep.subr.bf16.mxu0 0
        %902 = vmatpush1.bf16.xpose.msra.mxu0 0
        %903 = vmatprep.subr.bf16.mxu0 0
        %904 = vmatpush1.bf16.xpose.msra.mxu0 0
        %905 = vmatprep.subr.bf16.mxu0 0
        %906 = vmatpush1.bf16.xpose.msra.mxu0 0
        %907 = vmatprep.subr.bf16.mxu0 0
        %908 = vmatpush1.bf16.xpose.msra.mxu0 0
        %909 = vmatprep.subr.bf16.mxu0 0
        %910 = vmatpush1.bf16.xpose.msra.mxu0 0
        %911 = vmatprep.subr.bf16.mxu0 0
        %912 = vmatpush1.bf16.xpose.msra.mxu0 0
        %913 = vmatprep.subr.bf16.mxu0 0
        %914 = vmatpush1.bf16.xpose.msra.mxu0 0
        %915 = vmatprep.subr.bf16.mxu0 0
        %916 = vmatpush1.bf16.xpose.msra.mxu0 0
        %917 = vmatprep.subr.bf16.mxu0 0
        %918 = vmatpush1.bf16.xpose.msra.mxu0 0
        %919 = vmatprep.subr.bf16.mxu0 0
        %920 = vmatpush1.bf16.xpose.msra.mxu0 0
        %921 = vmatprep.subr.bf16.mxu0 0
        %922 = vmatpush1.bf16.xpose.msra.mxu0 0
        %923 = vmatprep.subr.bf16.mxu0 0
        %924 = vmatpush1.bf16.xpose.msra.mxu0 0
        %925 = vmatprep.mubr.bf16.mxu0 0
        %926 = vmatmul.mubr.bf16.gmra.mrb[0].mxu0 %v888
        %v927 = vpop.f32.mrb[0].mxu0
        %v928 = vadd.f32 0.0, %v927
        %v929 = vpop.f32.mrb[0].mxu0
        %v930 = vpop.f32.mrb[0].mxu0
        %v931 = vadd.f32 0.0, %v930
        %v932 = vpop.f32.mrb[0].mxu0
        %933 = vdwg.mxu0
        %v934 = vsel %vm758, %v928, -inf
        %935 = vmax.xlane.f32.xlu0 %v934
        %v936 = vpop.xlane.xlu0 %935
        %v937 = vsel %vm758, %v931, -inf
        %938 = vmax.xlane.f32.xlu0 %v937
        %v939 = vpop.xlane.xlu0 %938
        %v940 = vsub.f32 %v928, %v936
        %v941 = vsub.f32 %v931, %v939
        %v942 = vmul.f32 %v940, 1.442695
        %v943 = vpow.pop %v942
        %v944 = vmul.f32 %v941, 1.442695
        %v945 = vpow.pop %v944
        %v946 = vsel %vm758, %v943, 0.0
        %947 = vadd.xlane.f32.xlu0 %v946
        %v948 = vpop.xlane.xlu0 %947
        %v949 = vsel %vm758, %v945, 0.0
        %950 = vadd.xlane.f32.xlu0 %v949
        %v951 = vpop.xlane.xlu0 %950
        %v952 = vrcp.pop %v948
        %v953 = vrcp.pop %v951
        %v954 = vpack.c.bf16 %v945, %v943
        %956 = vrot.lane.b32.xlu0 %v617, 120
        %v957 = vpop.permute.xlu0 %956
        %v960 = vsel %vm758, %v954, 0
        %962 = vmatprep.subr.bf16.mxu0 0
        %963 = vmatpush1.bf16.msra.mxu0 %v957
        %964 = vmatprep.subr.bf16.mxu0 0
        %965 = vmatpush1.bf16.msra.mxu0 0
        %966 = vmatprep.subr.bf16.mxu0 0
        %967 = vmatpush1.bf16.msra.mxu0 0
        %968 = vmatprep.subr.bf16.mxu0 0
        %969 = vmatpush1.bf16.msra.mxu0 0
        %970 = vmatprep.subr.bf16.mxu0 0
        %971 = vmatpush1.bf16.msra.mxu0 0
        %972 = vmatprep.subr.bf16.mxu0 0
        %973 = vmatpush1.bf16.msra.mxu0 0
        %974 = vmatprep.subr.bf16.mxu0 0
        %975 = vmatpush1.bf16.msra.mxu0 0
        %976 = vmatprep.subr.bf16.mxu0 0
        %977 = vmatpush1.bf16.msra.mxu0 0
        %978 = vmatprep.subr.bf16.mxu0 0
        %979 = vmatpush1.bf16.msra.mxu0 0
        %980 = vmatprep.subr.bf16.mxu0 0
        %981 = vmatpush1.bf16.msra.mxu0 0
        %982 = vmatprep.subr.bf16.mxu0 0
        %983 = vmatpush1.bf16.msra.mxu0 0
        %984 = vmatprep.subr.bf16.mxu0 0
        %985 = vmatpush1.bf16.msra.mxu0 0
        %986 = vmatprep.subr.bf16.mxu0 0
        %987 = vmatpush1.bf16.msra.mxu0 0
        %988 = vmatprep.subr.bf16.mxu0 0
        %989 = vmatpush1.bf16.msra.mxu0 0
        %990 = vmatprep.subr.bf16.mxu0 0
        %991 = vmatpush1.bf16.msra.mxu0 0
        %992 = vmatprep.subr.bf16.mxu0 0
        %993 = vmatpush1.bf16.msra.mxu0 0
        %994 = vmatprep.mubr.bf16.mxu0 0
        %995 = vmatmul.mubr.bf16.gmra.mrb[0].mxu0 %v960
        %v996 = vpop.f32.mrb[0].mxu0
        %v997 = vadd.f32 0.0, %v996
        %v998 = vpop.f32.mrb[0].mxu0
        %v999 = vpop.f32.mrb[0].mxu0
        %v1000 = vadd.f32 0.0, %v999
        %v1001 = vpop.f32.mrb[0].mxu0
        %1002 = vdwg.mxu0
        %v1003 = vmul.f32 %v997, %v952
        %v1004 = vmul.f32 %v1000, %v953
        %v1005 = vpack.c.bf16 %v1004, %v1003
        %v1006 = vld [vmem:[#allocation4] sm:$0xff]
        %v1007 = vld [vmem:[#allocation4 + $0x8] sm:$0xff]
        %v1009 = vsel %vm710, %v1005, 0
        %v1012 = vsel %vm832, %v707, 0
        %1014 = vmatprep.subr.bf16.mxu0 0
        %1015 = vmatpush1.bf16.msra.mxu0 %v1012
        %1016 = vmatprep.subr.bf16.mxu0 0
        %1017 = vmatpush1.bf16.msra.mxu0 0
        %1018 = vmatprep.subr.bf16.mxu0 0
        %1019 = vmatpush1.bf16.msra.mxu0 0
        %1020 = vmatprep.subr.bf16.mxu0 0
        %1021 = vmatpush1.bf16.msra.mxu0 0
        %1022 = vmatprep.subr.bf16.mxu0 0
        %1023 = vmatpush1.bf16.msra.mxu0 0
        %1024 = vmatprep.subr.bf16.mxu0 0
        %1025 = vmatpush1.bf16.msra.mxu0 0
        %1026 = vmatprep.subr.bf16.mxu0 0
        %1027 = vmatpush1.bf16.msra.mxu0 0
        %1028 = vmatprep.subr.bf16.mxu0 0
        %1029 = vmatpush1.bf16.msra.mxu0 0
        %1030 = vmatprep.subr.bf16.mxu0 0
        %1031 = vmatpush1.bf16.msra.mxu0 0
        %1032 = vmatprep.subr.bf16.mxu0 0
        %1033 = vmatpush1.bf16.msra.mxu0 0
        %1034 = vmatprep.subr.bf16.mxu0 0
        %1035 = vmatpush1.bf16.msra.mxu0 0
        %1036 = vmatprep.subr.bf16.mxu0 0
        %1037 = vmatpush1.bf16.msra.mxu0 0
        %1038 = vmatprep.subr.bf16.mxu0 0
        %1039 = vmatpush1.bf16.msra.mxu0 0
        %1040 = vmatprep.subr.bf16.mxu0 0
        %1041 = vmatpush1.bf16.msra.mxu0 0
        %1042 = vmatprep.subr.bf16.mxu0 0
        %1043 = vmatpush1.bf16.msra.mxu0 0
        %1044 = vmatprep.subr.bf16.mxu0 0
        %1045 = vmatpush1.bf16.msra.mxu0 0
        %1046 = vmatprep.mubr.bf16.mxu0 0
        %1047 = vmatmul.mubr.bf16.gmra.mrb[0].mxu0 %v1009
        %v1048 = vpop.f32.mrb[0].mxu0
        %v1049 = vadd.f32 0.0, %v1048
        %v1050 = vpop.f32.mrb[0].mxu0
        %v1051 = vpop.f32.mrb[0].mxu0
        %v1052 = vadd.f32 0.0, %v1051
        %v1053 = vpop.f32.mrb[0].mxu0
        %1054 = vdwg.mxu0
        %v1055 = vadd.f32 %v1006, %v1049
        %v1056 = vadd.f32 %v1007, %v1052
        %1057 = vst.msk [vmem:[#allocation4] sm:$0xff] %vm652, %v1055
        %1058 = vst.msk [vmem:[#allocation4 + $0x8] sm:$0xff] %vm652, %v1056
        %1059 = vrot.lane.b32.xlu0 %v697, 112
        %v1060 = vpop.permute.xlu0 %1059
        %1061 = vrot.lane.b32.xlu0 %v614, 112
        %v1062 = vpop.permute.xlu0 %1061
        %v1064 = vsel %vm710, %v1060, 0
        %v1067 = vsel %vm710, %v1062, 0
        %1069 = vmatprep.subr.bf16.mxu0 0
        %1070 = vmatpush1.bf16.xpose.msra.mxu0 %v1067
        %1071 = vmatprep.subr.bf16.mxu0 0
        %1072 = vmatpush1.bf16.xpose.msra.mxu0 0
        %1073 = vmatprep.subr.bf16.mxu0 0
        %1074 = vmatpush1.bf16.xpose.msra.mxu0 0
        %1075 = vmatprep.subr.bf16.mxu0 0
        %1076 = vmatpush1.bf16.xpose.msra.mxu0 0
        %1077 = vmatprep.subr.bf16.mxu0 0
        %1078 = vmatpush1.bf16.xpose.msra.mxu0 0
        %1079 = vmatprep.subr.bf16.mxu0 0
        %1080 = vmatpush1.bf16.xpose.msra.mxu0 0
        %1081 = vmatprep.subr.bf16.mxu0 0
        %1082 = vmatpush1.bf16.xpose.msra.mxu0 0
        %1083 = vmatprep.subr.bf16.mxu0 0
        %1084 = vmatpush1.bf16.xpose.msra.mxu0 0
        %1085 = vmatprep.subr.bf16.mxu0 0
        %1086 = vmatpush1.bf16.xpose.msra.mxu0 0
        %1087 = vmatprep.subr.bf16.mxu0 0
        %1088 = vmatpush1.bf16.xpose.msra.mxu0 0
        %1089 = vmatprep.subr.bf16.mxu0 0
        %1090 = vmatpush1.bf16.xpose.msra.mxu0 0
        %1091 = vmatprep.subr.bf16.mxu0 0
        %1092 = vmatpush1.bf16.xpose.msra.mxu0 0
        %1093 = vmatprep.subr.bf16.mxu0 0
        %1094 = vmatpush1.bf16.xpose.msra.mxu0 0
        %1095 = vmatprep.subr.bf16.mxu0 0
        %1096 = vmatpush1.bf16.xpose.msra.mxu0 0
        %1097 = vmatprep.subr.bf16.mxu0 0
        %1098 = vmatpush1.bf16.xpose.msra.mxu0 0
        %1099 = vmatprep.subr.bf16.mxu0 0
        %1100 = vmatpush1.bf16.xpose.msra.mxu0 0
        %1101 = vmatprep.mubr.bf16.mxu0 0
        %1102 = vmatmul.mubr.bf16.gmra.mrb[0].mxu0 %v1064
        %v1103 = vpop.f32.mrb[0].mxu0
        %v1104 = vadd.f32 0.0, %v1103
        %v1105 = vpop.f32.mrb[0].mxu0
        %v1106 = vpop.f32.mrb[0].mxu0
        %v1107 = vadd.f32 0.0, %v1106
        %v1108 = vpop.f32.mrb[0].mxu0
        %1109 = vdwg.mxu0
        %v1110 = vsel %vm758, %v1104, -inf
        %1111 = vmax.xlane.f32.xlu0 %v1110
        %v1112 = vpop.xlane.xlu0 %1111
        %v1113 = vsel %vm758, %v1107, -inf
        %1114 = vmax.xlane.f32.xlu0 %v1113
        %v1115 = vpop.xlane.xlu0 %1114
        %v1116 = vsub.f32 %v1104, %v1112
        %v1117 = vsub.f32 %v1107, %v1115
        %v1118 = vmul.f32 %v1116, 1.442695
        %v1119 = vpow.pop %v1118
        %v1120 = vmul.f32 %v1117, 1.442695
        %v1121 = vpow.pop %v1120
        %v1122 = vsel %vm758, %v1119, 0.0
        %1123 = vadd.xlane.f32.xlu0 %v1122
        %v1124 = vpop.xlane.xlu0 %1123
        %v1125 = vsel %vm758, %v1121, 0.0
        %1126 = vadd.xlane.f32.xlu0 %v1125
        %v1127 = vpop.xlane.xlu0 %1126
        %v1128 = vrcp.pop %v1124
        %v1129 = vrcp.pop %v1127
        %v1130 = vpack.c.bf16 %v1121, %v1119
        %1131 = vrot.lane.b32.xlu0 %v617, 112
        %v1132 = vpop.permute.xlu0 %1131
        %v1135 = vsel %vm758, %v1130, 0
        %1137 = vmatprep.subr.bf16.mxu0 0
        %1138 = vmatpush1.bf16.msra.mxu0 %v1132
        %1139 = vmatprep.subr.bf16.mxu0 0
        %1140 = vmatpush1.bf16.msra.mxu0 0
        %1141 = vmatprep.subr.bf16.mxu0 0
        %1142 = vmatpush1.bf16.msra.mxu0 0
        %1143 = vmatprep.subr.bf16.mxu0 0
        %1144 = vmatpush1.bf16.msra.mxu0 0
        %1145 = vmatprep.subr.bf16.mxu0 0
        %1146 = vmatpush1.bf16.msra.mxu0 0
        %1147 = vmatprep.subr.bf16.mxu0 0
        %1148 = vmatpush1.bf16.msra.mxu0 0
        %1149 = vmatprep.subr.bf16.mxu0 0
        %1150 = vmatpush1.bf16.msra.mxu0 0
        %1151 = vmatprep.subr.bf16.mxu0 0
        %1152 = vmatpush1.bf16.msra.mxu0 0
        %1153 = vmatprep.subr.bf16.mxu0 0
        %1154 = vmatpush1.bf16.msra.mxu0 0
        %1155 = vmatprep.subr.bf16.mxu0 0
        %1156 = vmatpush1.bf16.msra.mxu0 0
        %1157 = vmatprep.subr.bf16.mxu0 0
        %1158 = vmatpush1.bf16.msra.mxu0 0
        %1159 = vmatprep.subr.bf16.mxu0 0
        %1160 = vmatpush1.bf16.msra.mxu0 0
        %1161 = vmatprep.subr.bf16.mxu0 0
        %1162 = vmatpush1.bf16.msra.mxu0 0
        %1163 = vmatprep.subr.bf16.mxu0 0
        %1164 = vmatpush1.bf16.msra.mxu0 0
        %1165 = vmatprep.subr.bf16.mxu0 0
        %1166 = vmatpush1.bf16.msra.mxu0 0
        %1167 = vmatprep.subr.bf16.mxu0 0
        %1168 = vmatpush1.bf16.msra.mxu0 0
        %1169 = vmatprep.mubr.bf16.mxu0 0
        %1170 = vmatmul.mubr.bf16.gmra.mrb[0].mxu0 %v1135
        %v1171 = vpop.f32.mrb[0].mxu0
        %v1172 = vadd.f32 0.0, %v1171
        %v1173 = vpop.f32.mrb[0].mxu0
        %v1174 = vpop.f32.mrb[0].mxu0
        %v1175 = vadd.f32 0.0, %v1174
        %v1176 = vpop.f32.mrb[0].mxu0
        %1177 = vdwg.mxu0
        %v1178 = vmul.f32 %v1172, %v1128
        %v1179 = vmul.f32 %v1175, %v1129
        %v1180 = vpack.c.bf16 %v1179, %v1178
        %v1181 = vld [vmem:[#allocation4] sm:$0xff]
        %v1182 = vld [vmem:[#allocation4 + $0x8] sm:$0xff]
        %v1184 = vsel %vm710, %v1180, 0
        %v1187 = vsel %vm832, %v708, 0
        %1189 = vmatprep.subr.bf16.mxu0 0
        %1190 = vmatpush1.bf16.msra.mxu0 %v1187
        %1191 = vmatprep.subr.bf16.mxu0 0
        %1192 = vmatpush1.bf16.msra.mxu0 0
        %1193 = vmatprep.subr.bf16.mxu0 0
        %1194 = vmatpush1.bf16.msra.mxu0 0
        %1195 = vmatprep.subr.bf16.mxu0 0
        %1196 = vmatpush1.bf16.msra.mxu0 0
        %1197 = vmatprep.subr.bf16.mxu0 0
        %1198 = vmatpush1.bf16.msra.mxu0 0
        %1199 = vmatprep.subr.bf16.mxu0 0
        %1200 = vmatpush1.bf16.msra.mxu0 0
        %1201 = vmatprep.subr.bf16.mxu0 0
        %1202 = vmatpush1.bf16.msra.mxu0 0
        %1203 = vmatprep.subr.bf16.mxu0 0
        %1204 = vmatpush1.bf16.msra.mxu0 0
        %1205 = vmatprep.subr.bf16.mxu0 0
        %1206 = vmatpush1.bf16.msra.mxu0 0
        %1207 = vmatprep.subr.bf16.mxu0 0
        %1208 = vmatpush1.bf16.msra.mxu0 0
        %1209 = vmatprep.subr.bf16.mxu0 0
        %1210 = vmatpush1.bf16.msra.mxu0 0
        %1211 = vmatprep.subr.bf16.mxu0 0
        %1212 = vmatpush1.bf16.msra.mxu0 0
        %1213 = vmatprep.subr.bf16.mxu0 0
        %1214 = vmatpush1.bf16.msra.mxu0 0
        %1215 = vmatprep.subr.bf16.mxu0 0
        %1216 = vmatpush1.bf16.msra.mxu0 0
        %1217 = vmatprep.subr.bf16.mxu0 0
        %1218 = vmatpush1.bf16.msra.mxu0 0
        %1219 = vmatprep.subr.bf16.mxu0 0
        %1220 = vmatpush1.bf16.msra.mxu0 0
        %1221 = vmatprep.mubr.bf16.mxu0 0
        %1222 = vmatmul.mubr.bf16.gmra.mrb[0].mxu0 %v1184
        %v1223 = vpop.f32.mrb[0].mxu0
        %v1224 = vadd.f32 0.0, %v1223
        %v1225 = vpop.f32.mrb[0].mxu0
        %v1226 = vpop.f32.mrb[0].mxu0
        %v1227 = vadd.f32 0.0, %v1226
        %v1228 = vpop.f32.mrb[0].mxu0
        %1229 = vdwg.mxu0
        %v1230 = vadd.f32 %v1181, %v1224
        %v1231 = vadd.f32 %v1182, %v1227
        %1232 = vst.msk [vmem:[#allocation4] sm:$0xff] %vm652, %v1230
        %1233 = vst.msk [vmem:[#allocation4 + $0x8] sm:$0xff] %vm652, %v1231
        %1234 = vrot.lane.b32.xlu0 %v697, 104
        %v1235 = vpop.permute.xlu0 %1234
        %1236 = vrot.lane.b32.xlu0 %v614, 104
        %v1237 = vpop.permute.xlu0 %1236
        %v1239 = vsel %vm710, %v1235, 0
        %v1242 = vsel %vm710, %v1237, 0
        %1244 = vmatprep.subr.bf16.mxu0 0
        %1245 = vmatpush1.bf16.xpose.msra.mxu0 %v1242
        %1246 = vmatprep.subr.bf16.mxu0 0
        %1247 = vmatpush1.bf16.xpose.msra.mxu0 0
        %1248 = vmatprep.subr.bf16.mxu0 0
        %1249 = vmatpush1.bf16.xpose.msra.mxu0 0
        %1250 = vmatprep.subr.bf16.mxu0 0
        %1251 = vmatpush1.bf16.xpose.msra.mxu0 0
        %1252 = vmatprep.subr.bf16.mxu0 0
        %1253 = vmatpush1.bf16.xpose.msra.mxu0 0
        %1254 = vmatprep.subr.bf16.mxu0 0
        %1255 = vmatpush1.bf16.xpose.msra.mxu0 0
        %1256 = vmatprep.subr.bf16.mxu0 0
        %1257 = vmatpush1.bf16.xpose.msra.mxu0 0
        %1258 = vmatprep.subr.bf16.mxu0 0
        %1259 = vmatpush1.bf16.xpose.msra.mxu0 0
        %1260 = vmatprep.subr.bf16.mxu0 0
        %1261 = vmatpush1.bf16.xpose.msra.mxu0 0
        %1262 = vmatprep.subr.bf16.mxu0 0
        %1263 = vmatpush1.bf16.xpose.msra.mxu0 0
        %1264 = vmatprep.subr.bf16.mxu0 0
        %1265 = vmatpush1.bf16.xpose.msra.mxu0 0
        %1266 = vmatprep.subr.bf16.mxu0 0
        %1267 = vmatpush1.bf16.xpose.msra.mxu0 0
        %1268 = vmatprep.subr.bf16.mxu0 0
        %1269 = vmatpush1.bf16.xpose.msra.mxu0 0
        %1270 = vmatprep.subr.bf16.mxu0 0
        %1271 = vmatpush1.bf16.xpose.msra.mxu0 0
        %1272 = vmatprep.subr.bf16.mxu0 0
        %1273 = vmatpush1.bf16.xpose.msra.mxu0 0
        %1274 = vmatprep.subr.bf16.mxu0 0
        %1275 = vmatpush1.bf16.xpose.msra.mxu0 0
        %1276 = vmatprep.mubr.bf16.mxu0 0
        %1277 = vmatmul.mubr.bf16.gmra.mrb[0].mxu0 %v1239
        %v1278 = vpop.f32.mrb[0].mxu0
        %v1279 = vadd.f32 0.0, %v1278
        %v1280 = vpop.f32.mrb[0].mxu0
        %v1281 = vpop.f32.mrb[0].mxu0
        %v1282 = vadd.f32 0.0, %v1281
        %v1283 = vpop.f32.mrb[0].mxu0
        %1284 = vdwg.mxu0
        %v1285 = vsel %vm758, %v1279, -inf
        %1286 = vmax.xlane.f32.xlu0 %v1285
        %v1287 = vpop.xlane.xlu0 %1286
        %v1288 = vsel %vm758, %v1282, -inf
        %1289 = vmax.xlane.f32.xlu0 %v1288
        %v1290 = vpop.xlane.xlu0 %1289
        %v1291 = vsub.f32 %v1279, %v1287
        %v1292 = vsub.f32 %v1282, %v1290
        %v1293 = vmul.f32 %v1291, 1.442695
        %v1294 = vpow.pop %v1293
        %v1295 = vmul.f32 %v1292, 1.442695
        %v1296 = vpow.pop %v1295
        %v1297 = vsel %vm758, %v1294, 0.0
        %1298 = vadd.xlane.f32.xlu0 %v1297
        %v1299 = vpop.xlane.xlu0 %1298
        %v1300 = vsel %vm758, %v1296, 0.0
        %1301 = vadd.xlane.f32.xlu0 %v1300
        %v1302 = vpop.xlane.xlu0 %1301
        %v1303 = vrcp.pop %v1299
        %v1304 = vrcp.pop %v1302
        %v1305 = vpack.c.bf16 %v1296, %v1294
        %1306 = vrot.lane.b32.xlu0 %v617, 104
        %v1307 = vpop.permute.xlu0 %1306
        %v1310 = vsel %vm758, %v1305, 0
        %1312 = vmatprep.subr.bf16.mxu0 0
        %1313 = vmatpush1.bf16.msra.mxu0 %v1307
        %1314 = vmatprep.subr.bf16.mxu0 0
        %1315 = vmatpush1.bf16.msra.mxu0 0
        %1316 = vmatprep.subr.bf16.mxu0 0
        %1317 = vmatpush1.bf16.msra.mxu0 0
        %1318 = vmatprep.subr.bf16.mxu0 0
        %1319 = vmatpush1.bf16.msra.mxu0 0
        %1320 = vmatprep.subr.bf16.mxu0 0
        %1321 = vmatpush1.bf16.msra.mxu0 0
        %1322 = vmatprep.subr.bf16.mxu0 0
        %1323 = vmatpush1.bf16.msra.mxu0 0
        %1324 = vmatprep.subr.bf16.mxu0 0
        %1325 = vmatpush1.bf16.msra.mxu0 0
        %1326 = vmatprep.subr.bf16.mxu0 0
        %1327 = vmatpush1.bf16.msra.mxu0 0
        %1328 = vmatprep.subr.bf16.mxu0 0
        %1329 = vmatpush1.bf16.msra.mxu0 0
        %1330 = vmatprep.subr.bf16.mxu0 0
        %1331 = vmatpush1.bf16.msra.mxu0 0
        %1332 = vmatprep.subr.bf16.mxu0 0
        %1333 = vmatpush1.bf16.msra.mxu0 0
        %1334 = vmatprep.subr.bf16.mxu0 0
        %1335 = vmatpush1.bf16.msra.mxu0 0
        %1336 = vmatprep.subr.bf16.mxu0 0
        %1337 = vmatpush1.bf16.msra.mxu0 0
        %1338 = vmatprep.subr.bf16.mxu0 0
        %1339 = vmatpush1.bf16.msra.mxu0 0
        %1340 = vmatprep.subr.bf16.mxu0 0
        %1341 = vmatpush1.bf16.msra.mxu0 0
        %1342 = vmatprep.subr.bf16.mxu0 0
        %1343 = vmatpush1.bf16.msra.mxu0 0
        %1344 = vmatprep.mubr.bf16.mxu0 0
        %1345 = vmatmul.mubr.bf16.gmra.mrb[0].mxu0 %v1310
        %v1346 = vpop.f32.mrb[0].mxu0
        %v1347 = vadd.f32 0.0, %v1346
        %v1348 = vpop.f32.mrb[0].mxu0
        %v1349 = vpop.f32.mrb[0].mxu0
        %v1350 = vadd.f32 0.0, %v1349
        %v1351 = vpop.f32.mrb[0].mxu0
        %1352 = vdwg.mxu0
        %v1353 = vmul.f32 %v1347, %v1303
        %v1354 = vmul.f32 %v1350, %v1304
        %v1355 = vpack.c.bf16 %v1354, %v1353
        %v1356 = vld [vmem:[#allocation4] sm:$0xff]
        %v1357 = vld [vmem:[#allocation4 + $0x8] sm:$0xff]
        %v1359 = vsel %vm710, %v1355, 0
        %v1362 = vsel %vm832, %v709, 0
        %1364 = vmatprep.subr.bf16.mxu0 0
        %1365 = vmatpush1.bf16.msra.mxu0 %v1362
        %1366 = vmatprep.subr.bf16.mxu0 0
        %1367 = vmatpush1.bf16.msra.mxu0 0
        %1368 = vmatprep.subr.bf16.mxu0 0
        %1369 = vmatpush1.bf16.msra.mxu0 0
        %1370 = vmatprep.subr.bf16.mxu0 0
        %1371 = vmatpush1.bf16.msra.mxu0 0
        %1372 = vmatprep.subr.bf16.mxu0 0
        %1373 = vmatpush1.bf16.msra.mxu0 0
        %1374 = vmatprep.subr.bf16.mxu0 0
        %1375 = vmatpush1.bf16.msra.mxu0 0
        %1376 = vmatprep.subr.bf16.mxu0 0
        %1377 = vmatpush1.bf16.msra.mxu0 0
        %1378 = vmatprep.subr.bf16.mxu0 0
        %1379 = vmatpush1.bf16.msra.mxu0 0
        %1380 = vmatprep.subr.bf16.mxu0 0
        %1381 = vmatpush1.bf16.msra.mxu0 0
        %1382 = vmatprep.subr.bf16.mxu0 0
        %1383 = vmatpush1.bf16.msra.mxu0 0
        %1384 = vmatprep.subr.bf16.mxu0 0
        %1385 = vmatpush1.bf16.msra.mxu0 0
        %1386 = vmatprep.subr.bf16.mxu0 0
        %1387 = vmatpush1.bf16.msra.mxu0 0
        %1388 = vmatprep.subr.bf16.mxu0 0
        %1389 = vmatpush1.bf16.msra.mxu0 0
        %1390 = vmatprep.subr.bf16.mxu0 0
        %1391 = vmatpush1.bf16.msra.mxu0 0
        %1392 = vmatprep.subr.bf16.mxu0 0
        %1393 = vmatpush1.bf16.msra.mxu0 0
        %1394 = vmatprep.subr.bf16.mxu0 0
        %1395 = vmatpush1.bf16.msra.mxu0 0
        %1396 = vmatprep.mubr.bf16.mxu0 0
        %1397 = vmatmul.mubr.bf16.gmra.mrb[0].mxu0 %v1359
        %v1398 = vpop.f32.mrb[0].mxu0
        %v1399 = vadd.f32 0.0, %v1398
        %v1400 = vpop.f32.mrb[0].mxu0
        %v1401 = vpop.f32.mrb[0].mxu0
        %v1402 = vadd.f32 0.0, %v1401
        %v1403 = vpop.f32.mrb[0].mxu0
        %1404 = vdwg.mxu0
        %v1405 = vadd.f32 %v1356, %v1399
        %v1406 = vadd.f32 %v1357, %v1402
        %1407 = vst.msk [vmem:[#allocation4] sm:$0xff] %vm652, %v1405
        %1408 = vst.msk [vmem:[#allocation4 + $0x8] sm:$0xff] %vm652, %v1406
        // Predicated region
        $region85: #{tpu_custom_call.1} parent=55 // pred_check
          %p1409 = pneg %p698
        $region86: #{tpu_custom_call.1} parent=55 // pred_check_branch
          %1411 = sbr.rel (%p1409) target = $region88
        $region87: #{tpu_custom_call.1} parent=55 // pred_region
          %v1412 = vld [vmem:[#allocation4] sm:$0xff]
          %v1413 = vld [vmem:[#allocation4 + $0x8] sm:$0xff]
          %v1414 = vld [vmem:[%s8] sm:$0x1]
          %v1416 = vlaneseq
          %v1417 = vshrl.u32 %v1416, 7
          %v1418 = vsub.s32 0, %v1417
          %v1419 = vrot.slane %v1414, %v1418
          %v1421 = vadd.f32 %v1412, %v1419
          %v1422 = vadd.f32 %v1413, %v1419
          %1423 = vst.msk [vmem:[%s458] sm:$0xff] %vm652, %v1421
          %1424 = vst.msk [vmem:[%s458 + $0x8] sm:$0xff] %vm652, %v1422
        $region88: #{tpu_custom_call.1} parent=55 // pred_fallthru
          _
        %s1425 = sand.u32 %s260, 1
        %s1426 = scalar_lea.sflag [#allocation7], %s1425
        %s1427 = sand.u32 %s260, 1
        %s1428 = smul.addr %s1427, 16
        %s1429 = scalar_lea.vmem [#allocation14], %s1428
        // Predicated region
        $region89: #{tpu_custom_call.1} parent=55 // pred_check
          %p1430 = pneg %p270
        $region90: #{tpu_custom_call.1} parent=55 // pred_check_branch
          %1432 = sbr.rel (%p1430) target = $region92
        $region91: #{tpu_custom_call.1} parent=55 // pred_region
          %s1433 = smul.u32 2, %s36
          %s1435 = ssub.s32 256, 256
          %1436 = vsyncadd %s1426, %s1435
          %s1437 = smul.addr %s35, 2
          %s1438 = sadd.s32 %s1433, %s1437
          %s1439 = smul.addr %s1438, 128
          %s1440 = scalar_lea.hbm %s9, %s1439
          %s1441 = sshll.u32 %s1429, 4
          %s1442 = int_to_ptr.vmem [resolvable:$true] %s1441
          %1447 = dma.vmem_to_hbm [thread:$0]  %s1442, 256, %s1440, %s1426, 128, 128, 8
        $region92: #{tpu_custom_call.1} parent=55 // pred_fallthru
          _
      $region56: #{tpu_custom_call.1} parent=5 // pred_fallthru
        _
      %p1448 = scmp.le.s32.totalorder 2, %s25
      // Predicated region
      $region93: #{tpu_custom_call.1} parent=5 // pred_check
        %p1449 = pneg %p1448
      $region94: #{tpu_custom_call.1} parent=5 // pred_check_branch
        %1451 = sbr.rel (%p1449) target = $region96
      $region95: #{tpu_custom_call.1} parent=5 // pred_region
        %s1452 = ssub.s32 %s25, 2
        // Predicated region
        $region97: #{tpu_custom_call.1} parent=95 // pred_check
          %p1453 = pneg %p276
        $region98: #{tpu_custom_call.1} parent=95 // pred_check_branch
          %1455 = sbr.rel (%p1453) target = $region100
        $region99: #{tpu_custom_call.1} parent=95 // pred_region
          %s1456 = sand.u32 %s261, 1
          %s1457 = scalar_lea.sflag [#allocation7], %s1456
          %s1458 = sand.u32 %s261, 1
          %s1459 = smul.addr %s1458, 16
          %s1460 = scalar_lea.vmem [#allocation14], %s1459
          %1461 = dma.done %s1457, 256
        $region100: #{tpu_custom_call.1} parent=95 // pred_fallthru
          _
      $region96: #{tpu_custom_call.1} parent=5 // pred_fallthru
        _
    $region6: #{tpu_custom_call.1} parent=1 // loop_footer
      %s29 = sadd.s32 1, %s25
    $region7: #{tpu_custom_call.1} parent=1 // loop_footer_branch
      %24 = sbr.rel target = $region3
    $region8: #{tpu_custom_call.1} parent=1 // loop_exit
      _
    %1462 = vsyncpa [#allocation6], 1
    %s1463 = scalar_lea.sflag [#allocation6], 1
    %1464 = vsyncpa %s1463, 1
    %1465 = vsyncpa [#allocation9], 1
    %s1466 = scalar_lea.sflag [#allocation9], 1
    %1467 = vsyncpa %s1466, 1
    %1468 = vsyncpa [#allocation12], 1
    %1469 = vsyncpa [#allocation7], 1
    %s1470 = scalar_lea.sflag [#allocation7], 1
    %1471 = vsyncpa %s1470, 1

</llo_original>
